<compile_context>
chip_gen: v7x
topology: tpu7x:2x2x1
jax: 0.10.0
libtpu: 0.0.40
codegen_flags: <defaults>
</compile_context>

<pallas_src>
import jax
import jax.numpy as jnp
from jax.experimental import pallas as pl
from jax.experimental.pallas import tpu as pltpu

EPS = 1e-5


def _round_up(x, m):
    return (x + m - 1) // m * m


def _pick_tile_h(h):
    for t in (8, 4, 2, 1):
        if h % t == 0:
            return t
    return 1


def _bottleneck_kernel(x_ref, xt_ref, xb_ref,
                       w1_ref, b1_ref, w2_ref, b2_ref, w3_ref, b3_ref,
                       o_ref, pad_ref):
    # x_ref : (1, TH, W, Cin)  f32, the TH interior rows of this tile
    # xt_ref: (1, 1, W, Cin)   f32, row above the tile (clamped at the border)
    # xb_ref: (1, 1, W, Cin)   f32, row below the tile (clamped at the border)
    # w1_ref: (Cin, P)  bf16 (BN1 folded)      b1_ref: (1, P)   f32
    # w2_ref: (9*P, P)  bf16 (BN2 folded)      b2_ref: (1, P)   f32
    # w3_ref: (P, Cin)  bf16 (BN3 folded)      b3_ref: (1, Cin) f32
    # pad_ref: (TH+2, Wp, P) bf16 VMEM scratch (spatially padded conv2 input)
    TH = x_ref.shape[1]
    W = x_ref.shape[2]
    Cin = x_ref.shape[3]
    P = w1_ref.shape[1]
    HW = TH * W

    h = pl.program_id(1)
    nh = pl.num_programs(1)

    w1 = w1_ref[...]
    b1 = b1_ref[...]

    # ---- conv1 (1x1) + bias + relu on the interior rows (bf16 MXU, f32 acc) --
    x16 = x_ref[...].reshape(HW, Cin).astype(jnp.bfloat16)
    out1 = jnp.dot(x16, w1, preferred_element_type=jnp.float32)
    out1 = jnp.maximum(out1 + b1, 0.0)                             # (HW, P) f32
    # single f32->bf16 cast on store; all 9 im2col window reads stay bf16
    pad_ref[1:TH + 1, 1:W + 1, :] = out1.reshape(TH, W, P).astype(jnp.bfloat16)

    # ---- conv1 on the halo rows; zero at the true image border --------------
    def halo_out1(row_ref, valid):
        r16 = row_ref[...].reshape(W, Cin).astype(jnp.bfloat16)
        o = jnp.dot(r16, w1, preferred_element_type=jnp.float32)
        o = jnp.maximum(o + b1, 0.0)
        return (o * valid.astype(jnp.float32)).astype(jnp.bfloat16)   # (W, P)

    pad_ref[0:1, 1:W + 1, :] = halo_out1(xt_ref, h > 0).reshape(1, W, P)
    pad_ref[TH + 1:TH + 2, 1:W + 1, :] = halo_out1(xb_ref, h < nh - 1).reshape(1, W, P)

    # left / right zero columns (also covers the four corners); tiny strips
    zcol = jnp.zeros((TH + 2, 1, P), jnp.bfloat16)
    pad_ref[:, 0:1, :] = zcol
    pad_ref[:, W + 1:W + 2, :] = zcol

    # ---- conv2 (3x3, stride=1, dilation=1, pad=1) + bias + relu -------------
    # im2col: lane-concatenate the 9 shifted bf16 windows -> (HW, 9P), one
    # big-K matmul against w2 reshaped to (9P, P).
    cols = [pad_ref[ky:ky + TH, kx:kx + W, :].reshape(HW, P)
            for ky in range(3) for kx in range(3)]
    im2col = jnp.concatenate(cols, axis=-1)                         # (HW, 9P) bf16
    out2 = jnp.dot(im2col, w2_ref[...], preferred_element_type=jnp.float32)
    out2 = jnp.maximum(out2 + b2_ref[...], 0.0)                     # (HW, P) f32

    # ---- conv3 (1x1) + bias + residual (f32) + relu --------------------------
    out3 = jnp.dot(out2.astype(jnp.bfloat16), w3_ref[...],
                   preferred_element_type=jnp.float32)
    out3 = out3 + b3_ref[...]
    x_res = x_ref[...].reshape(HW, Cin)                 # f32 residual, short live range
    out3 = jnp.maximum(out3 + x_res, 0.0)                           # (HW, Cin)

    o_ref[...] = out3.reshape(1, TH, W, Cin).astype(o_ref.dtype)


def _fold_bn(gamma, beta, mean, var):
    scale = gamma / jnp.sqrt(var + EPS)
    bias = beta - mean * scale
    return scale.astype(jnp.float32), bias.astype(jnp.float32)


def _prepare_params(params):
    """Fold BN scales into the conv weights (bf16); keep BN biases in f32."""
    P = params["w1"].shape[1]
    s1, b1 = _fold_bn(params["g1"], params["be1"], params["m1"], params["v1"])
    s2, b2 = _fold_bn(params["g2"], params["be2"], params["m2"], params["v2"])
    s3, b3 = _fold_bn(params["g3"], params["be3"], params["m3"], params["v3"])
    w1f = (params["w1"] * s1[None, :]).astype(jnp.bfloat16)               # (Cin, P)
    w2f = (params["w2"] * s2[None, None, None, :]).reshape(9 * P, P)       # (9P, P)
    w2f = w2f.astype(jnp.bfloat16)
    w3f = (params["w3"] * s3[None, :]).astype(jnp.bfloat16)               # (P, 4P)
    return (w1f, b1[None, :], w2f, b2[None, :], w3f, b3[None, :])


def bottleneck_forward_nhwc(x_nhwc, params, tile_h=None):
    """x_nhwc: (N, H, W, Cin) float32 with Cin == 4 * planes."""
    N, H, W, Cin = x_nhwc.shape
    P = params["w1"].shape[1]
    assert Cin == 4 * P, "identity shortcut requires inplanes == planes * 4"
    w1f, b1, w2f, b2, w3f, b3 = _prepare_params(params)

    if tile_h is None:
        tile_h = _pick_tile_h(H)
    assert H % tile_h == 0
    nh = H // tile_h
    # pad the scratch sublane (W) dim so kx=0 window slices stay tile-aligned
    wp = _round_up(W + 2, 16)

    def rep(a):  # whole-array operand, identical for every grid step
        nd = a.ndim
        return pl.BlockSpec(a.shape, lambda n, h, _nd=nd: (0,) * _nd)

    return pl.pallas_call(
        _bottleneck_kernel,
        out_shape=jax.ShapeDtypeStruct((N, H, W, Cin), x_nhwc.dtype),
        grid_spec=pltpu.PrefetchScalarGridSpec(
            num_scalar_prefetch=0,
            grid=(N, nh),
            in_specs=[
                # TH interior rows of this tile
                pl.BlockSpec((1, tile_h, W, Cin), lambda n, h: (n, h, 0, 0)),
                # 1-row halos (row above / below), clamped at the image border;
                # the kernel zeroes them when this tile touches the border.
                pl.BlockSpec((1, 1, W, Cin),
                             lambda n, h: (n, jnp.maximum(h * tile_h - 1, 0), 0, 0)),
                pl.BlockSpec((1, 1, W, Cin),
                             lambda n, h: (n, jnp.minimum((h + 1) * tile_h, H - 1), 0, 0)),
                rep(w1f), rep(b1), rep(w2f), rep(b2), rep(w3f), rep(b3),
            ],
            out_specs=pl.BlockSpec((1, tile_h, W, Cin), lambda n, h: (n, h, 0, 0)),
            scratch_shapes=[pltpu.VMEM((tile_h + 2, wp, P), jnp.bfloat16)],
        ),
        compiler_params=pltpu.CompilerParams(
            dimension_semantics=("parallel", "parallel"),
            vmem_limit_bytes=32 * 1024 * 1024),
    )(x_nhwc, x_nhwc, x_nhwc, w1f, b1, w2f, b2, w3f, b3)


@jax.jit
def bottleneck_forward(x_nchw, params):
    """PyTorch-layout entry point: (N, Cin, H, W) -> (N, Cin, H, W).

    The NCHW<->NHWC transposes only exist to match the nn.Module boundary;
    chained blocks should call bottleneck_forward_nhwc directly (NHWC end-to-end).
    """
    x = jnp.transpose(x_nchw, (0, 2, 3, 1))            # NCHW -> NHWC
    out = bottleneck_forward_nhwc(x, params)
    return jnp.transpose(out, (0, 3, 1, 2))            # NHWC -> NCHW


# ---------------------------------------------------------------------------
# pure-JAX f32 reference (numeric sanity check)
# ---------------------------------------------------------------------------
def _conv1x1_ref(x, w):        # x NHWC, w (Cin, Cout)
    return jnp.einsum("nhwc,co->nhwo", x, w)


def _conv3x3_ref(x, w):        # w (3, 3, Cin, Cout), pad=1, stride=1
    N, H, W, C = x.shape
    xp = jnp.pad(x, ((0, 0), (1, 1), (1, 1), (0, 0)))
    out = 0.0
    for ky in range(3):
        for kx in range(3):
            out = out + jnp.einsum("nhwc,co->nhwo",
                                   xp[:, ky:ky + H, kx:kx + W, :], w[ky, kx])
    return out


def bottleneck_reference(x_nchw, params):
    x = jnp.transpose(x_nchw, (0, 2, 3, 1))
    s1, b1 = _fold_bn(params["g1"], params["be1"], params["m1"], params["v1"])
    s2, b2 = _fold_bn(params["g2"], params["be2"], params["m2"], params["v2"])
    s3, b3 = _fold_bn(params["g3"], params["be3"], params["m3"], params["v3"])
    out = jnp.maximum(_conv1x1_ref(x, params["w1"]) * s1[None, :] + b1[None, :], 0.0)
    out = jnp.maximum(_conv3x3_ref(out, params["w2"]) * s2[None, :] + b2[None, :], 0.0)
    out = _conv1x1_ref(out, params["w3"]) * s3[None, :] + b3[None, :]
    out = jnp.maximum(out + x, 0.0)
    return jnp.transpose(out, (0, 3, 1, 2))


def make_params(key, inplanes, planes):
    keys = jax.random.split(key, 16)
    f32 = jnp.float32

    def bn(k0, k1, k2, k3, c):
        return (jax.random.uniform(k0, (c,), f32, 0.5, 1.5),   # gamma
                jax.random.normal(k1, (c,), f32) * 0.1,        # beta
                jax.random.normal(k2, (c,), f32) * 0.1,        # running_mean
                jax.random.uniform(k3, (c,), f32, 0.5, 1.5))   # running_var

    g1, be1, m1, v1 = bn(keys[3], keys[4], keys[5], keys[6], planes)
    g2, be2, m2, v2 = bn(keys[7], keys[8], keys[9], keys[10], planes)
    g3, be3, m3, v3 = bn(keys[11], keys[12], keys[13], keys[14], planes * 4)
    return dict(
        # conv weights stored in matmul form: (Cin, Cout) / (3, 3, Cin, Cout)
        w1=jax.random.normal(keys[0], (inplanes, planes), f32) * 0.1,
        w2=jax.random.normal(keys[1], (3, 3, planes, planes), f32) * 0.1,
        w3=jax.random.normal(keys[2], (planes, planes * 4), f32) * 0.1,
        g1=g1, be1=be1, m1=m1, v1=v1,
        g2=g2, be2=be2, m2=m2, v2=v2,
        g3=g3, be3=be3, m3=m3, v3=v3,
    )


if __name__ == "__main__":
    key = jax.random.PRNGKey(0)
    kx, kp = jax.random.split(key)

    # real layer1 shape: planes=64, inplanes=256 -> lane-dense residual/output
    # and non-MXU-starved matmul shapes (K=256 / 576 / 64, N=64 / 64 / 256).
    planes = 64
    inplanes = planes * 4
    N, H, W = 2, 16, 16

    x = jax.random.normal(kx, (N, inplanes, H, W), jnp.float32)   # NCHW input
    params = make_params(kp, inplanes, planes)

    out = jax.block_until_ready(bottleneck_forward(x, params))
    ref = bottleneck_reference(x, params)

    assert out.shape == (N, inplanes, H, W)
    # relative error check (bf16 matmul operands, f32 accumulate + f32 residual)
    rel_err = float(jnp.max(jnp.abs(out - ref)) / (jnp.max(jnp.abs(ref)) + 1e-6))
    assert rel_err < 3e-2, f"relative mismatch vs. JAX reference: {rel_err}"

    print("KERNEL_OK")
</pallas_src>

<mosaic_0001>
module attributes {stable_mosaic.version = 11 : i64} {
  func.func @_bottleneck_kernel(%arg0: i32, %arg1: i32, %arg2: memref<1x8x16x256xf32, #tpu.memory_space<vmem>>, %arg3: memref<1x1x16x256xf32, #tpu.memory_space<vmem>>, %arg4: memref<1x1x16x256xf32, #tpu.memory_space<vmem>>, %arg5: memref<256x64xbf16, #tpu.memory_space<vmem>>, %arg6: memref<1x64xf32, #tpu.memory_space<vmem>>, %arg7: memref<576x64xbf16, #tpu.memory_space<vmem>>, %arg8: memref<1x64xf32, #tpu.memory_space<vmem>>, %arg9: memref<64x256xbf16, #tpu.memory_space<vmem>>, %arg10: memref<1x256xf32, #tpu.memory_space<vmem>>, %arg11: memref<1x8x16x256xf32, #tpu.memory_space<vmem>>, %arg12: memref<10x32x64xbf16, #tpu.memory_space<vmem>>) attributes {dimension_semantics = [#tpu.dimension_semantics<parallel>, #tpu.dimension_semantics<parallel>], iteration_bounds = array<i64: 2, 2>, scalar_prefetch = 0 : i64, scratch_operands = 1 : i64, tpu.core_type = #tpu.core_type<tc>, window_params = [{transform_indices = @transform_0, window_bounds = array<i64: 1, 8, 16, 256>}, {transform_indices = @transform_1, window_bounds = array<i64: 1, 1, 16, 256>}, {transform_indices = @transform_2, window_bounds = array<i64: 1, 1, 16, 256>}, {pipeline_mode = #tpu.pipeline_mode<synchronous>, transform_indices = @transform_3, window_bounds = array<i64: 256, 64>}, {pipeline_mode = #tpu.pipeline_mode<synchronous>, transform_indices = @transform_4, window_bounds = array<i64: 1, 64>}, {pipeline_mode = #tpu.pipeline_mode<synchronous>, transform_indices = @transform_5, window_bounds = array<i64: 576, 64>}, {pipeline_mode = #tpu.pipeline_mode<synchronous>, transform_indices = @transform_6, window_bounds = array<i64: 1, 64>}, {pipeline_mode = #tpu.pipeline_mode<synchronous>, transform_indices = @transform_7, window_bounds = array<i64: 64, 256>}, {pipeline_mode = #tpu.pipeline_mode<synchronous>, transform_indices = @transform_8, window_bounds = array<i64: 1, 256>}, {transform_indices = @transform_9, window_bounds = array<i64: 1, 8, 16, 256>}]} {
    %c0 = arith.constant 0 : index
    %c0_0 = arith.constant 0 : index
    %0 = vector.load %arg5[%c0, %c0_0] : memref<256x64xbf16, #tpu.memory_space<vmem>>, vector<256x64xbf16>
    %c0_1 = arith.constant 0 : index
    %c0_2 = arith.constant 0 : index
    %1 = vector.load %arg6[%c0_1, %c0_2] : memref<1x64xf32, #tpu.memory_space<vmem>>, vector<1x64xf32>
    %c0_3 = arith.constant 0 : index
    %c0_4 = arith.constant 0 : index
    %c0_5 = arith.constant 0 : index
    %c0_6 = arith.constant 0 : index
    %2 = vector.load %arg2[%c0_3, %c0_4, %c0_5, %c0_6] : memref<1x8x16x256xf32, #tpu.memory_space<vmem>>, vector<1x8x16x256xf32>
    %3 = vector.shape_cast %2 : vector<1x8x16x256xf32> to vector<128x256xf32>
    %4 = arith.truncf %3 : vector<128x256xf32> to vector<128x256xbf16>
    %cst = arith.constant dense<0.000000e+00> : vector<128x64xf32>
    %5 = tpu.matmul %4, %0, %cst {dimension_numbers = #tpu.dot_dimension_numbers<[1], [0], [0], [1], [0, 0, 1, 1], [], []>} : vector<128x256xbf16>, vector<256x64xbf16>, vector<128x64xf32> -> vector<128x64xf32>
    %6 = vector.broadcast %1 : vector<1x64xf32> to vector<128x64xf32>
    %7 = arith.addf %5, %6 : vector<128x64xf32>
    %cst_7 = arith.constant 0.000000e+00 : f32
    %8 = vector.broadcast %cst_7 : f32 to vector<128x64xf32>
    %9 = arith.maximumf %7, %8 : vector<128x64xf32>
    %10 = vector.shape_cast %9 : vector<128x64xf32> to vector<8x16x64xf32>
    %11 = arith.truncf %10 : vector<8x16x64xf32> to vector<8x16x64xbf16>
    %c1 = arith.constant 1 : index
    %c1_8 = arith.constant 1 : index
    %c0_9 = arith.constant 0 : index
    %12 = vector.load %arg12[%c1, %c1_8, %c0_9] : memref<10x32x64xbf16, #tpu.memory_space<vmem>>, vector<8x16x64xbf16>
    tpu.vector_store %arg12[%c1, %c1_8, %c0_9], %11 {strides = array<i32>} : memref<10x32x64xbf16, #tpu.memory_space<vmem>>, vector<8x16x64xbf16>,
    %c0_i32 = arith.constant 0 : i32
    %13 = arith.cmpi sgt, %arg1, %c0_i32 : i32
    %c0_10 = arith.constant 0 : index
    %c0_11 = arith.constant 0 : index
    %c0_12 = arith.constant 0 : index
    %c0_13 = arith.constant 0 : index
    %14 = vector.load %arg3[%c0_10, %c0_11, %c0_12, %c0_13] : memref<1x1x16x256xf32, #tpu.memory_space<vmem>>, vector<1x1x16x256xf32>
    %15 = vector.shape_cast %14 : vector<1x1x16x256xf32> to vector<16x256xf32>
    %16 = arith.truncf %15 : vector<16x256xf32> to vector<16x256xbf16>
    %cst_14 = arith.constant dense<0.000000e+00> : vector<16x64xf32>
    %17 = tpu.matmul %16, %0, %cst_14 {dimension_numbers = #tpu.dot_dimension_numbers<[1], [0], [0], [1], [0, 0, 1, 1], [], []>} : vector<16x256xbf16>, vector<256x64xbf16>, vector<16x64xf32> -> vector<16x64xf32>
    %18 = vector.broadcast %1 : vector<1x64xf32> to vector<16x64xf32>
    %19 = arith.addf %17, %18 : vector<16x64xf32>
    %cst_15 = arith.constant 0.000000e+00 : f32
    %20 = vector.broadcast %cst_15 : f32 to vector<16x64xf32>
    %21 = arith.maximumf %19, %20 : vector<16x64xf32>
    %22 = arith.extui %13 : i1 to i32
    %23 = arith.sitofp %22 : i32 to f32
    %24 = vector.broadcast %23 : f32 to vector<16x64xf32>
    %25 = arith.mulf %21, %24 : vector<16x64xf32>
    %26 = arith.truncf %25 : vector<16x64xf32> to vector<16x64xbf16>
    %27 = vector.shape_cast %26 : vector<16x64xbf16> to vector<1x16x64xbf16>
    %c0_16 = arith.constant 0 : index
    %c1_17 = arith.constant 1 : index
    %c0_18 = arith.constant 0 : index
    %28 = vector.load %arg12[%c0_16, %c1_17, %c0_18] : memref<10x32x64xbf16, #tpu.memory_space<vmem>>, vector<1x16x64xbf16>
    tpu.vector_store %arg12[%c0_16, %c1_17, %c0_18], %27 {strides = array<i32>} : memref<10x32x64xbf16, #tpu.memory_space<vmem>>, vector<1x16x64xbf16>,
    %c1_i32 = arith.constant 1 : i32
    %29 = arith.cmpi slt, %arg1, %c1_i32 : i32
    %c0_19 = arith.constant 0 : index
    %c0_20 = arith.constant 0 : index
    %c0_21 = arith.constant 0 : index
    %c0_22 = arith.constant 0 : index
    %30 = vector.load %arg4[%c0_19, %c0_20, %c0_21, %c0_22] : memref<1x1x16x256xf32, #tpu.memory_space<vmem>>, vector<1x1x16x256xf32>
    %31 = vector.shape_cast %30 : vector<1x1x16x256xf32> to vector<16x256xf32>
    %32 = arith.truncf %31 : vector<16x256xf32> to vector<16x256xbf16>
    %cst_23 = arith.constant dense<0.000000e+00> : vector<16x64xf32>
    %33 = tpu.matmul %32, %0, %cst_23 {dimension_numbers = #tpu.dot_dimension_numbers<[1], [0], [0], [1], [0, 0, 1, 1], [], []>} : vector<16x256xbf16>, vector<256x64xbf16>, vector<16x64xf32> -> vector<16x64xf32>
    %34 = vector.broadcast %1 : vector<1x64xf32> to vector<16x64xf32>
    %35 = arith.addf %33, %34 : vector<16x64xf32>
    %cst_24 = arith.constant 0.000000e+00 : f32
    %36 = vector.broadcast %cst_24 : f32 to vector<16x64xf32>
    %37 = arith.maximumf %35, %36 : vector<16x64xf32>
    %38 = arith.extui %29 : i1 to i32
    %39 = arith.sitofp %38 : i32 to f32
    %40 = vector.broadcast %39 : f32 to vector<16x64xf32>
    %41 = arith.mulf %37, %40 : vector<16x64xf32>
    %42 = arith.truncf %41 : vector<16x64xf32> to vector<16x64xbf16>
    %43 = vector.shape_cast %42 : vector<16x64xbf16> to vector<1x16x64xbf16>
    %c9 = arith.constant 9 : index
    %c1_25 = arith.constant 1 : index
    %c0_26 = arith.constant 0 : index
    %44 = vector.load %arg12[%c9, %c1_25, %c0_26] : memref<10x32x64xbf16, #tpu.memory_space<vmem>>, vector<1x16x64xbf16>
    tpu.vector_store %arg12[%c9, %c1_25, %c0_26], %43 {strides = array<i32>} : memref<10x32x64xbf16, #tpu.memory_space<vmem>>, vector<1x16x64xbf16>,
    %cst_27 = arith.constant 0.000000e+00 : bf16
    %45 = vector.broadcast %cst_27 : bf16 to vector<10x1x64xbf16>
    %c0_28 = arith.constant 0 : index
    %c0_29 = arith.constant 0 : index
    %c0_30 = arith.constant 0 : index
    %46 = vector.load %arg12[%c0_28, %c0_29, %c0_30] : memref<10x32x64xbf16, #tpu.memory_space<vmem>>, vector<10x1x64xbf16>
    tpu.vector_store %arg12[%c0_28, %c0_29, %c0_30], %45 {strides = array<i32>} : memref<10x32x64xbf16, #tpu.memory_space<vmem>>, vector<10x1x64xbf16>,
    %c0_31 = arith.constant 0 : index
    %c17 = arith.constant 17 : index
    %c0_32 = arith.constant 0 : index
    %47 = vector.load %arg12[%c0_31, %c17, %c0_32] : memref<10x32x64xbf16, #tpu.memory_space<vmem>>, vector<10x1x64xbf16>
    tpu.vector_store %arg12[%c0_31, %c17, %c0_32], %45 {strides = array<i32>} : memref<10x32x64xbf16, #tpu.memory_space<vmem>>, vector<10x1x64xbf16>,
    %c0_33 = arith.constant 0 : index
    %c0_34 = arith.constant 0 : index
    %c0_35 = arith.constant 0 : index
    %48 = vector.load %arg12[%c0_33, %c0_34, %c0_35] : memref<10x32x64xbf16, #tpu.memory_space<vmem>>, vector<8x16x64xbf16>
    %49 = vector.shape_cast %48 : vector<8x16x64xbf16> to vector<128x64xbf16>
    %c0_36 = arith.constant 0 : index
    %c1_37 = arith.constant 1 : index
    %c0_38 = arith.constant 0 : index
    %50 = vector.load %arg12[%c0_36, %c1_37, %c0_38] : memref<10x32x64xbf16, #tpu.memory_space<vmem>>, vector<8x16x64xbf16>
    %51 = vector.shape_cast %50 : vector<8x16x64xbf16> to vector<128x64xbf16>
    %c0_39 = arith.constant 0 : index
    %c2 = arith.constant 2 : index
    %c0_40 = arith.constant 0 : index
    %52 = vector.load %arg12[%c0_39, %c2, %c0_40] : memref<10x32x64xbf16, #tpu.memory_space<vmem>>, vector<8x16x64xbf16>
    %53 = vector.shape_cast %52 : vector<8x16x64xbf16> to vector<128x64xbf16>
    %c1_41 = arith.constant 1 : index
    %c0_42 = arith.constant 0 : index
    %c0_43 = arith.constant 0 : index
    %54 = vector.load %arg12[%c1_41, %c0_42, %c0_43] : memref<10x32x64xbf16, #tpu.memory_space<vmem>>, vector<8x16x64xbf16>
    %55 = vector.shape_cast %54 : vector<8x16x64xbf16> to vector<128x64xbf16>
    %c1_44 = arith.constant 1 : index
    %c1_45 = arith.constant 1 : index
    %c0_46 = arith.constant 0 : index
    %56 = vector.load %arg12[%c1_44, %c1_45, %c0_46] : memref<10x32x64xbf16, #tpu.memory_space<vmem>>, vector<8x16x64xbf16>
    %57 = vector.shape_cast %56 : vector<8x16x64xbf16> to vector<128x64xbf16>
    %c1_47 = arith.constant 1 : index
    %c2_48 = arith.constant 2 : index
    %c0_49 = arith.constant 0 : index
    %58 = vector.load %arg12[%c1_47, %c2_48, %c0_49] : memref<10x32x64xbf16, #tpu.memory_space<vmem>>, vector<8x16x64xbf16>
    %59 = vector.shape_cast %58 : vector<8x16x64xbf16> to vector<128x64xbf16>
    %c2_50 = arith.constant 2 : index
    %c0_51 = arith.constant 0 : index
    %c0_52 = arith.constant 0 : index
    %60 = vector.load %arg12[%c2_50, %c0_51, %c0_52] : memref<10x32x64xbf16, #tpu.memory_space<vmem>>, vector<8x16x64xbf16>
    %61 = vector.shape_cast %60 : vector<8x16x64xbf16> to vector<128x64xbf16>
    %c2_53 = arith.constant 2 : index
    %c1_54 = arith.constant 1 : index
    %c0_55 = arith.constant 0 : index
    %62 = vector.load %arg12[%c2_53, %c1_54, %c0_55] : memref<10x32x64xbf16, #tpu.memory_space<vmem>>, vector<8x16x64xbf16>
    %63 = vector.shape_cast %62 : vector<8x16x64xbf16> to vector<128x64xbf16>
    %c2_56 = arith.constant 2 : index
    %c2_57 = arith.constant 2 : index
    %c0_58 = arith.constant 0 : index
    %64 = vector.load %arg12[%c2_56, %c2_57, %c0_58] : memref<10x32x64xbf16, #tpu.memory_space<vmem>>, vector<8x16x64xbf16>
    %65 = vector.shape_cast %64 : vector<8x16x64xbf16> to vector<128x64xbf16>
    %66 = tpu.concatenate %49, %51, %53, %55, %57, %59, %61, %63, %65 in 1 : vector<128x64xbf16>, vector<128x64xbf16>, vector<128x64xbf16>, vector<128x64xbf16>, vector<128x64xbf16>, vector<128x64xbf16>, vector<128x64xbf16>, vector<128x64xbf16>, vector<128x64xbf16> -> vector<128x576xbf16>
    %c0_59 = arith.constant 0 : index
    %c0_60 = arith.constant 0 : index
    %67 = vector.load %arg7[%c0_59, %c0_60] : memref<576x64xbf16, #tpu.memory_space<vmem>>, vector<576x64xbf16>
    %cst_61 = arith.constant dense<0.000000e+00> : vector<128x64xf32>
    %68 = tpu.matmul %66, %67, %cst_61 {dimension_numbers = #tpu.dot_dimension_numbers<[1], [0], [0], [1], [0, 0, 1, 1], [], []>} : vector<128x576xbf16>, vector<576x64xbf16>, vector<128x64xf32> -> vector<128x64xf32>
    %c0_62 = arith.constant 0 : index
    %c0_63 = arith.constant 0 : index
    %69 = vector.load %arg8[%c0_62, %c0_63] : memref<1x64xf32, #tpu.memory_space<vmem>>, vector<1x64xf32>
    %70 = vector.broadcast %69 : vector<1x64xf32> to vector<128x64xf32>
    %71 = arith.addf %68, %70 : vector<128x64xf32>
    %cst_64 = arith.constant 0.000000e+00 : f32
    %72 = vector.broadcast %cst_64 : f32 to vector<128x64xf32>
    %73 = arith.maximumf %71, %72 : vector<128x64xf32>
    %74 = arith.truncf %73 : vector<128x64xf32> to vector<128x64xbf16>
    %c0_65 = arith.constant 0 : index
    %c0_66 = arith.constant 0 : index
    %75 = vector.load %arg9[%c0_65, %c0_66] : memref<64x256xbf16, #tpu.memory_space<vmem>>, vector<64x256xbf16>
    %cst_67 = arith.constant dense<0.000000e+00> : vector<128x256xf32>
    %76 = tpu.matmul %74, %75, %cst_67 {dimension_numbers = #tpu.dot_dimension_numbers<[1], [0], [0], [1], [0, 0, 1, 1], [], []>} : vector<128x64xbf16>, vector<64x256xbf16>, vector<128x256xf32> -> vector<128x256xf32>
    %c0_68 = arith.constant 0 : index
    %c0_69 = arith.constant 0 : index
    %77 = vector.load %arg10[%c0_68, %c0_69] : memref<1x256xf32, #tpu.memory_space<vmem>>, vector<1x256xf32>
    %78 = vector.broadcast %77 : vector<1x256xf32> to vector<128x256xf32>
    %79 = arith.addf %76, %78 : vector<128x256xf32>
    %c0_70 = arith.constant 0 : index
    %c0_71 = arith.constant 0 : index
    %c0_72 = arith.constant 0 : index
    %c0_73 = arith.constant 0 : index
    %80 = vector.load %arg2[%c0_70, %c0_71, %c0_72, %c0_73] : memref<1x8x16x256xf32, #tpu.memory_space<vmem>>, vector<1x8x16x256xf32>
    %81 = vector.shape_cast %80 : vector<1x8x16x256xf32> to vector<128x256xf32>
    %82 = arith.addf %79, %81 : vector<128x256xf32>
    %cst_74 = arith.constant 0.000000e+00 : f32
    %83 = vector.broadcast %cst_74 : f32 to vector<128x256xf32>
    %84 = arith.maximumf %82, %83 : vector<128x256xf32>
    %85 = vector.shape_cast %84 : vector<128x256xf32> to vector<1x8x16x256xf32>
    %c0_75 = arith.constant 0 : index
    %c0_76 = arith.constant 0 : index
    %c0_77 = arith.constant 0 : index
    %c0_78 = arith.constant 0 : index
    %86 = vector.load %arg11[%c0_75, %c0_76, %c0_77, %c0_78] : memref<1x8x16x256xf32, #tpu.memory_space<vmem>>, vector<1x8x16x256xf32>
    tpu.vector_store %arg11[%c0_75, %c0_76, %c0_77, %c0_78], %85 {strides = array<i32>} : memref<1x8x16x256xf32, #tpu.memory_space<vmem>>, vector<1x8x16x256xf32>,
    return
  }
  func.func @transform_0(%arg0: i32, %arg1: i32) -> (i32, i32, i32, i32) {
    %c0_i32 = arith.constant 0 : i32
    %c0_i32_0 = arith.constant 0 : i32
    %c0_i32_1 = arith.constant 0 : i32
    return %arg0, %arg1, %c0_i32, %c0_i32_0 : i32, i32, i32, i32
  }
  func.func @transform_1(%arg0: i32, %arg1: i32) -> (i32, i32, i32, i32) {
    %c8_i32 = arith.constant 8 : i32
    %0 = arith.muli %arg1, %c8_i32 : i32
    %c1_i32 = arith.constant 1 : i32
    %1 = arith.subi %0, %c1_i32 : i32
    %c0_i32 = arith.constant 0 : i32
    %2 = arith.maxsi %1, %c0_i32 : i32
    %c0_i32_0 = arith.constant 0 : i32
    %c0_i32_1 = arith.constant 0 : i32
    %c0_i32_2 = arith.constant 0 : i32
    return %arg0, %2, %c0_i32_0, %c0_i32_1 : i32, i32, i32, i32
  }
  func.func @transform_2(%arg0: i32, %arg1: i32) -> (i32, i32, i32, i32) {
    %c1_i32 = arith.constant 1 : i32
    %0 = arith.addi %arg1, %c1_i32 : i32
    %c8_i32 = arith.constant 8 : i32
    %1 = arith.muli %0, %c8_i32 : i32
    %c15_i32 = arith.constant 15 : i32
    %2 = arith.minsi %1, %c15_i32 : i32
    %c0_i32 = arith.constant 0 : i32
    %c0_i32_0 = arith.constant 0 : i32
    %c0_i32_1 = arith.constant 0 : i32
    return %arg0, %2, %c0_i32, %c0_i32_0 : i32, i32, i32, i32
  }
  func.func @transform_3(%arg0: i32, %arg1: i32) -> (i32, i32) {
    %c0_i32 = arith.constant 0 : i32
    %c0_i32_0 = arith.constant 0 : i32
    %c0_i32_1 = arith.constant 0 : i32
    return %c0_i32, %c0_i32_0 : i32, i32
  }
  func.func @transform_4(%arg0: i32, %arg1: i32) -> (i32, i32) {
    %c0_i32 = arith.constant 0 : i32
    %c0_i32_0 = arith.constant 0 : i32
    %c0_i32_1 = arith.constant 0 : i32
    return %c0_i32, %c0_i32_0 : i32, i32
  }
  func.func @transform_5(%arg0: i32, %arg1: i32) -> (i32, i32) {
    %c0_i32 = arith.constant 0 : i32
    %c0_i32_0 = arith.constant 0 : i32
    %c0_i32_1 = arith.constant 0 : i32
    return %c0_i32, %c0_i32_0 : i32, i32
  }
  func.func @transform_6(%arg0: i32, %arg1: i32) -> (i32, i32) {
    %c0_i32 = arith.constant 0 : i32
    %c0_i32_0 = arith.constant 0 : i32
    %c0_i32_1 = arith.constant 0 : i32
    return %c0_i32, %c0_i32_0 : i32, i32
  }
  func.func @transform_7(%arg0: i32, %arg1: i32) -> (i32, i32) {
    %c0_i32 = arith.constant 0 : i32
    %c0_i32_0 = arith.constant 0 : i32
    %c0_i32_1 = arith.constant 0 : i32
    return %c0_i32, %c0_i32_0 : i32, i32
  }
  func.func @transform_8(%arg0: i32, %arg1: i32) -> (i32, i32) {
    %c0_i32 = arith.constant 0 : i32
    %c0_i32_0 = arith.constant 0 : i32
    %c0_i32_1 = arith.constant 0 : i32
    return %c0_i32, %c0_i32_0 : i32, i32
  }
  func.func @transform_9(%arg0: i32, %arg1: i32) -> (i32, i32, i32, i32) {
    %c0_i32 = arith.constant 0 : i32
    %c0_i32_0 = arith.constant 0 : i32
    %c0_i32_1 = arith.constant 0 : i32
    return %arg0, %arg1, %c0_i32, %c0_i32_0 : i32, i32, i32, i32
  }
}

</mosaic_0001>

<llo_original>
// kernel: bottleneck_forward.1
$region0: #{bottleneck_forward.1}
  #allocation0 [shape = 'u32[]', space=smem, size = 0x4, offset = 0x4, fixed_abs, tag = 'smem constant byte address 0x4 - core index']
  #allocation1 [shape = 'u32[144,128]{1,0:T(1,128)}', space=vmem, size = 0x12000, scoped, tag = 'internal scratch']
  #allocation2 [shape = 'bf16[10,32,64]{2,1,0:T(16,128)(2,1)}', space=vmem, size = 0x14000, scoped, tag = 'scratch operand']
  %s0 = inlined_call_operand.vmem [shape: f32[2,16,16,256], index: 0, kind: input, shape index: {}, may-alias: {0,1,2}]
  %s1 = inlined_call_operand.vmem [shape: f32[2,16,16,256], index: 1, kind: input, shape index: {}, may-alias: {0,1,2}]
  %s2 = inlined_call_operand.vmem [shape: f32[2,16,16,256], index: 2, kind: input, shape index: {}, may-alias: {0,1,2}]
  %s3 = inlined_call_operand.vmem [shape: bf16[256,64], index: 3, kind: input, shape index: {}]
  %s4 = inlined_call_operand.vmem [shape: f32[1,64], index: 4, kind: input, shape index: {}]
  %s5 = inlined_call_operand.vmem [shape: bf16[576,64], index: 5, kind: input, shape index: {}]
  %s6 = inlined_call_operand.vmem [shape: f32[1,64], index: 6, kind: input, shape index: {}]
  %s7 = inlined_call_operand.vmem [shape: bf16[64,256], index: 7, kind: input, shape index: {}]
  %s8 = inlined_call_operand.vmem [shape: f32[1,256], index: 8, kind: input, shape index: {}]
  %s9 = inlined_call_operand.hbm [shape: f32[2,16,16,256], index: 9, kind: output, shape index: {}]
  %s10 = sld [smem:[#allocation0]]
  $region69: #{bottleneck_forward.1} parent=0
    _
  %s12 = ssub.s32 1, %s10
  %s13 = scalar_select 0, %s12, %s10
  $region1: #{bottleneck_forward.1} parent=0
    #allocation3 [shape = 'u8[262144]{0}', space=vmem, size = 0x40000, scoped, tag = 'output window, operand 0']
    #allocation4 [shape = 's32[2]{0}', space=sflag, size = 0x8, scoped, tag = 'scoped memory for bottleneck_forward.1']
    %14 = vsyncpa [#allocation4], 0
    %s15 = scalar_lea.sflag [#allocation4], 1
    %16 = vsyncpa %s15, 0
    loop: start=0, step=1, limit=6
    $region2: #{bottleneck_forward.1} parent=1 // loop_pre_header
      _
    $region3: #{bottleneck_forward.1} parent=1 // loop_header
      %s18 = sphi 0, %s22
      %p19 = scmp.ge.s32.totalorder %s18, 6
      %s25 = sphi 0, %s37
      %s26 = sphi 0, %s33
      %s27 = sphi 0, %s25
      %s28 = sphi 0, %s26
      %s29 = sphi 0, %s27
      %s30 = sphi 0, %s28
      %s42 = sphi 0, %s44
      %s45 = sphi 0, %s42
      %s46 = sphi 0, %s45
      %s62 = sphi 0, %s46
      %s78 = sphi 0, %s80
      %s81 = sphi 0, %s78
      %s82 = sphi 0, %s81
      %s98 = sphi 0, %s82
      %s114 = sphi 0, %s116
      %s117 = sphi 0, %s114
      %s118 = sphi 0, %s117
      %s134 = sphi 0, %s118
      %s138 = sphi 0, %s138
      %s140 = sphi 0, %s138
      %s141 = sphi 0, %s140
      %s155 = sphi 0, %s141
      %s159 = sphi 0, %s159
      %s161 = sphi 0, %s159
      %s162 = sphi 0, %s161
      %s176 = sphi 0, %s162
      %s180 = sphi 0, %s180
      %s182 = sphi 0, %s180
      %s183 = sphi 0, %s182
      %s197 = sphi 0, %s183
      %s201 = sphi 0, %s201
      %s203 = sphi 0, %s201
      %s204 = sphi 0, %s203
      %s218 = sphi 0, %s204
      %s222 = sphi 0, %s222
      %s224 = sphi 0, %s222
      %s225 = sphi 0, %s224
      %s239 = sphi 0, %s225
      %s243 = sphi 0, %s243
      %s245 = sphi 0, %s243
      %s246 = sphi 0, %s245
      %s260 = sphi 0, %s246
      %s268 = sphi 0, %s270
      %s271 = sphi 0, %s268
      %s272 = sphi 0, %s271
      %s288 = sphi 0, %s272
    $region4: #{bottleneck_forward.1} parent=1 // loop_header_branch
      %21 = sbr.rel (%p19) target = $region8
    $region5: #{bottleneck_forward.1} parent=1 // loop_body
      %s23 = ssub.s32 %s18, 1
      %s24 = ssub.s32 %s18, 2
      %s31 = sadd.s32 1, %s26
      %p32 = scmp.ge.s32.totalorder %s31, 2
      %s33 = scalar_select %p32, 0, %s31
      %s34 = sadd.s32 1, %s25
      %s35 = scalar_select %p32, %s34, %s25
      %p36 = scmp.ge.s32.totalorder %s35, 2
      %s37 = scalar_select %p36, 0, %s35
      %s38 = ssub.s32 %s25, %s37
      %s39 = ssub.s32 %s26, %s33
      %s40 = sor.u32 %s38, %s39
      %p41 = scmp.eq.s32.totalorder %s40, 0
      %s43 = sadd.s32 %s42, 1
      %s44 = scalar_select %p41, %s42, %s43
      %p47 = pneg %p41
      %p48 = scmp.eq.s32.totalorder %s18, 3
      %p49 = por %p47, %p48
      %p50 = scmp.ne.s32.totalorder %s42, %s45
      %p51 = scmp.eq.s32.totalorder %s18, 0
      %p52 = por %p50, %p51
      %p53 = scmp.ne.s32.totalorder %s42, %s45
      %p54 = scmp.eq.s32.totalorder %s23, 3
      %p55 = por %p53, %p54
      %p56 = scmp.ne.s32.totalorder %s45, %s46
      %p57 = scmp.eq.s32.totalorder %s23, 0
      %p58 = por %p56, %p57
      %p59 = scmp.ne.s32.totalorder %s45, %s46
      %p60 = scmp.eq.s32.totalorder %s24, 3
      %p61 = por %p59, %p60
      %p63 = scmp.ne.s32.totalorder %s46, %s62
      %p64 = scmp.eq.s32.totalorder %s24, 0
      %p65 = por %p63, %p64
      %s66 = smul.u32 %s26, 8
      %s67 = ssub.s32 %s66, 1
      %p68 = scmp.gt.s32.totalorder %s67, 0
      %s69 = scalar_select %p68, %s67, 0
      %s70 = smul.u32 %s33, 8
      %s71 = ssub.s32 %s70, 1
      %p72 = scmp.gt.s32.totalorder %s71, 0
      %s73 = scalar_select %p72, %s71, 0
      %s74 = ssub.s32 %s25, %s37
      %s75 = ssub.s32 %s69, %s73
      %s76 = sor.u32 %s74, %s75
      %p77 = scmp.eq.s32.totalorder %s76, 0
      %s79 = sadd.s32 %s78, 1
      %s80 = scalar_select %p77, %s78, %s79
      %p83 = pneg %p77
      %p84 = scmp.eq.s32.totalorder %s18, 3
      %p85 = por %p83, %p84
      %p86 = scmp.ne.s32.totalorder %s78, %s81
      %p87 = scmp.eq.s32.totalorder %s18, 0
      %p88 = por %p86, %p87
      %p89 = scmp.ne.s32.totalorder %s78, %s81
      %p90 = scmp.eq.s32.totalorder %s23, 3
      %p91 = por %p89, %p90
      %p92 = scmp.ne.s32.totalorder %s81, %s82
      %p93 = scmp.eq.s32.totalorder %s23, 0
      %p94 = por %p92, %p93
      %p95 = scmp.ne.s32.totalorder %s81, %s82
      %p96 = scmp.eq.s32.totalorder %s24, 3
      %p97 = por %p95, %p96
      %p99 = scmp.ne.s32.totalorder %s82, %s98
      %p100 = scmp.eq.s32.totalorder %s24, 0
      %p101 = por %p99, %p100
      %s102 = sadd.s32 %s26, 1
      %s103 = smul.u32 %s102, 8
      %p104 = scmp.lt.s32.totalorder %s103, 15
      %s105 = scalar_select %p104, %s103, 15
      %s106 = sadd.s32 %s33, 1
      %s107 = smul.u32 %s106, 8
      %p108 = scmp.lt.s32.totalorder %s107, 15
      %s109 = scalar_select %p108, %s107, 15
      %s110 = ssub.s32 %s25, %s37
      %s111 = ssub.s32 %s105, %s109
      %s112 = sor.u32 %s110, %s111
      %p113 = scmp.eq.s32.totalorder %s112, 0
      %s115 = sadd.s32 %s114, 1
      %s116 = scalar_select %p113, %s114, %s115
      %p119 = pneg %p113
      %p120 = scmp.eq.s32.totalorder %s18, 3
      %p121 = por %p119, %p120
      %p122 = scmp.ne.s32.totalorder %s114, %s117
      %p123 = scmp.eq.s32.totalorder %s18, 0
      %p124 = por %p122, %p123
      %p125 = scmp.ne.s32.totalorder %s114, %s117
      %p126 = scmp.eq.s32.totalorder %s23, 3
      %p127 = por %p125, %p126
      %p128 = scmp.ne.s32.totalorder %s117, %s118
      %p129 = scmp.eq.s32.totalorder %s23, 0
      %p130 = por %p128, %p129
      %p131 = scmp.ne.s32.totalorder %s117, %s118
      %p132 = scmp.eq.s32.totalorder %s24, 3
      %p133 = por %p131, %p132
      %p135 = scmp.ne.s32.totalorder %s118, %s134
      %p136 = scmp.eq.s32.totalorder %s24, 0
      %p137 = por %p135, %p136
      %s139 = sadd.s32 %s138, 1
      %p142 = scmp.eq.s32.totalorder %s18, 3
      %p143 = scmp.ne.s32.totalorder %s138, %s140
      %p144 = scmp.eq.s32.totalorder %s18, 0
      %p145 = por %p143, %p144
      %p146 = scmp.ne.s32.totalorder %s138, %s140
      %p147 = scmp.eq.s32.totalorder %s23, 3
      %p148 = por %p146, %p147
      %p149 = scmp.ne.s32.totalorder %s140, %s141
      %p150 = scmp.eq.s32.totalorder %s23, 0
      %p151 = por %p149, %p150
      %p152 = scmp.ne.s32.totalorder %s140, %s141
      %p153 = scmp.eq.s32.totalorder %s24, 3
      %p154 = por %p152, %p153
      %p156 = scmp.ne.s32.totalorder %s141, %s155
      %p157 = scmp.eq.s32.totalorder %s24, 0
      %p158 = por %p156, %p157
      %s160 = sadd.s32 %s159, 1
      %p163 = scmp.eq.s32.totalorder %s18, 3
      %p164 = scmp.ne.s32.totalorder %s159, %s161
      %p165 = scmp.eq.s32.totalorder %s18, 0
      %p166 = por %p164, %p165
      %p167 = scmp.ne.s32.totalorder %s159, %s161
      %p168 = scmp.eq.s32.totalorder %s23, 3
      %p169 = por %p167, %p168
      %p170 = scmp.ne.s32.totalorder %s161, %s162
      %p171 = scmp.eq.s32.totalorder %s23, 0
      %p172 = por %p170, %p171
      %p173 = scmp.ne.s32.totalorder %s161, %s162
      %p174 = scmp.eq.s32.totalorder %s24, 3
      %p175 = por %p173, %p174
      %p177 = scmp.ne.s32.totalorder %s162, %s176
      %p178 = scmp.eq.s32.totalorder %s24, 0
      %p179 = por %p177, %p178
      %s181 = sadd.s32 %s180, 1
      %p184 = scmp.eq.s32.totalorder %s18, 3
      %p185 = scmp.ne.s32.totalorder %s180, %s182
      %p186 = scmp.eq.s32.totalorder %s18, 0
      %p187 = por %p185, %p186
      %p188 = scmp.ne.s32.totalorder %s180, %s182
      %p189 = scmp.eq.s32.totalorder %s23, 3
      %p190 = por %p188, %p189
      %p191 = scmp.ne.s32.totalorder %s182, %s183
      %p192 = scmp.eq.s32.totalorder %s23, 0
      %p193 = por %p191, %p192
      %p194 = scmp.ne.s32.totalorder %s182, %s183
      %p195 = scmp.eq.s32.totalorder %s24, 3
      %p196 = por %p194, %p195
      %p198 = scmp.ne.s32.totalorder %s183, %s197
      %p199 = scmp.eq.s32.totalorder %s24, 0
      %p200 = por %p198, %p199
      %s202 = sadd.s32 %s201, 1
      %p205 = scmp.eq.s32.totalorder %s18, 3
      %p206 = scmp.ne.s32.totalorder %s201, %s203
      %p207 = scmp.eq.s32.totalorder %s18, 0
      %p208 = por %p206, %p207
      %p209 = scmp.ne.s32.totalorder %s201, %s203
      %p210 = scmp.eq.s32.totalorder %s23, 3
      %p211 = por %p209, %p210
      %p212 = scmp.ne.s32.totalorder %s203, %s204
      %p213 = scmp.eq.s32.totalorder %s23, 0
      %p214 = por %p212, %p213
      %p215 = scmp.ne.s32.totalorder %s203, %s204
      %p216 = scmp.eq.s32.totalorder %s24, 3
      %p217 = por %p215, %p216
      %p219 = scmp.ne.s32.totalorder %s204, %s218
      %p220 = scmp.eq.s32.totalorder %s24, 0
      %p221 = por %p219, %p220
      %s223 = sadd.s32 %s222, 1
      %p226 = scmp.eq.s32.totalorder %s18, 3
      %p227 = scmp.ne.s32.totalorder %s222, %s224
      %p228 = scmp.eq.s32.totalorder %s18, 0
      %p229 = por %p227, %p228
      %p230 = scmp.ne.s32.totalorder %s222, %s224
      %p231 = scmp.eq.s32.totalorder %s23, 3
      %p232 = por %p230, %p231
      %p233 = scmp.ne.s32.totalorder %s224, %s225
      %p234 = scmp.eq.s32.totalorder %s23, 0
      %p235 = por %p233, %p234
      %p236 = scmp.ne.s32.totalorder %s224, %s225
      %p237 = scmp.eq.s32.totalorder %s24, 3
      %p238 = por %p236, %p237
      %p240 = scmp.ne.s32.totalorder %s225, %s239
      %p241 = scmp.eq.s32.totalorder %s24, 0
      %p242 = por %p240, %p241
      %s244 = sadd.s32 %s243, 1
      %p247 = scmp.eq.s32.totalorder %s18, 3
      %p248 = scmp.ne.s32.totalorder %s243, %s245
      %p249 = scmp.eq.s32.totalorder %s18, 0
      %p250 = por %p248, %p249
      %p251 = scmp.ne.s32.totalorder %s243, %s245
      %p252 = scmp.eq.s32.totalorder %s23, 3
      %p253 = por %p251, %p252
      %p254 = scmp.ne.s32.totalorder %s245, %s246
      %p255 = scmp.eq.s32.totalorder %s23, 0
      %p256 = por %p254, %p255
      %p257 = scmp.ne.s32.totalorder %s245, %s246
      %p258 = scmp.eq.s32.totalorder %s24, 3
      %p259 = por %p257, %p258
      %p261 = scmp.ne.s32.totalorder %s246, %s260
      %p262 = scmp.eq.s32.totalorder %s24, 0
      %p263 = por %p261, %p262
      %s264 = ssub.s32 %s25, %s37
      %s265 = ssub.s32 %s26, %s33
      %s266 = sor.u32 %s264, %s265
      %p267 = scmp.eq.s32.totalorder %s266, 0
      %s269 = sadd.s32 %s268, 1
      %s270 = scalar_select %p267, %s268, %s269
      %p273 = pneg %p267
      %p274 = scmp.eq.s32.totalorder %s18, 3
      %p275 = por %p273, %p274
      %p276 = scmp.ne.s32.totalorder %s268, %s271
      %p277 = scmp.eq.s32.totalorder %s18, 0
      %p278 = por %p276, %p277
      %p279 = scmp.ne.s32.totalorder %s268, %s271
      %p280 = scmp.eq.s32.totalorder %s23, 3
      %p281 = por %p279, %p280
      %p282 = scmp.ne.s32.totalorder %s271, %s272
      %p283 = scmp.eq.s32.totalorder %s23, 0
      %p284 = por %p282, %p283
      %p285 = scmp.ne.s32.totalorder %s271, %s272
      %p286 = scmp.eq.s32.totalorder %s24, 3
      %p287 = por %p285, %p286
      %p289 = scmp.ne.s32.totalorder %s272, %s288
      %p290 = scmp.eq.s32.totalorder %s24, 0
      %p291 = por %p289, %p290
      %p292 = scmp.le.s32.totalorder 1, %s18
      %p293 = scmp.lt.s32.totalorder %s18, 5
      %p294 = pnand %p292, %p293
      %p295 = pneg %p294
      // Predicated region
      $region9: #{bottleneck_forward.1} parent=5 // pred_check
        _
      $region10: #{bottleneck_forward.1} parent=5 // pred_check_branch
        %297 = sbr.rel (%p294) target = $region12
      $region11: #{bottleneck_forward.1} parent=5 // pred_region
        %s298 = ssub.s32 %s18, 1
        // Predicated region
        $region13: #{bottleneck_forward.1} parent=11 // pred_check
          %p299 = pneg %p151
        $region14: #{bottleneck_forward.1} parent=11 // pred_check_branch
          %301 = sbr.rel (%p299) target = $region16
        $region15: #{bottleneck_forward.1} parent=11 // pred_region
          _
        $region16: #{bottleneck_forward.1} parent=11 // pred_fallthru
          _
        // Predicated region
        $region17: #{bottleneck_forward.1} parent=11 // pred_check
          %p302 = pneg %p172
        $region18: #{bottleneck_forward.1} parent=11 // pred_check_branch
          %304 = sbr.rel (%p302) target = $region20
        $region19: #{bottleneck_forward.1} parent=11 // pred_region
          _
        $region20: #{bottleneck_forward.1} parent=11 // pred_fallthru
          _
        // Predicated region
        $region21: #{bottleneck_forward.1} parent=11 // pred_check
          %p305 = pneg %p193
        $region22: #{bottleneck_forward.1} parent=11 // pred_check_branch
          %307 = sbr.rel (%p305) target = $region24
        $region23: #{bottleneck_forward.1} parent=11 // pred_region
          _
        $region24: #{bottleneck_forward.1} parent=11 // pred_fallthru
          _
        // Predicated region
        $region25: #{bottleneck_forward.1} parent=11 // pred_check
          %p308 = pneg %p214
        $region26: #{bottleneck_forward.1} parent=11 // pred_check_branch
          %310 = sbr.rel (%p308) target = $region28
        $region27: #{bottleneck_forward.1} parent=11 // pred_region
          _
        $region28: #{bottleneck_forward.1} parent=11 // pred_fallthru
          _
        // Predicated region
        $region29: #{bottleneck_forward.1} parent=11 // pred_check
          %p311 = pneg %p235
        $region30: #{bottleneck_forward.1} parent=11 // pred_check_branch
          %313 = sbr.rel (%p311) target = $region32
        $region31: #{bottleneck_forward.1} parent=11 // pred_region
          _
        $region32: #{bottleneck_forward.1} parent=11 // pred_fallthru
          _
        // Predicated region
        $region33: #{bottleneck_forward.1} parent=11 // pred_check
          %p314 = pneg %p256
        $region34: #{bottleneck_forward.1} parent=11 // pred_check_branch
          %316 = sbr.rel (%p314) target = $region36
        $region35: #{bottleneck_forward.1} parent=11 // pred_region
          _
        $region36: #{bottleneck_forward.1} parent=11 // pred_fallthru
          _
      $region12: #{bottleneck_forward.1} parent=5 // pred_fallthru
        _
      %p317 = scmp.lt.s32.totalorder %s18, 4
      // Predicated region
      $region37: #{bottleneck_forward.1} parent=5 // pred_check
        %p318 = pneg %p317
      $region38: #{bottleneck_forward.1} parent=5 // pred_check_branch
        %320 = sbr.rel (%p318) target = $region40
      $region39: #{bottleneck_forward.1} parent=5 // pred_region
        // Predicated region
        $region41: #{bottleneck_forward.1} parent=39 // pred_check
          %p321 = pneg %p52
        $region42: #{bottleneck_forward.1} parent=39 // pred_check_branch
          %323 = sbr.rel (%p321) target = $region44
        $region43: #{bottleneck_forward.1} parent=39 // pred_region
          %s324 = smul.u32 8, %s26
          %p325 = scmp.lt.s32.totalorder %s25, 1
          %s326 = scalar_select %p325, %s25, 1
          %p327 = scmp.lt.s32.totalorder %s324, 15
          %s328 = scalar_select %p327, %s324, 15
          %s329 = smul.addr %s328, 4
          %s330 = smul.addr %s326, 64
          %s331 = sadd.s32 %s329, %s330
          %s332 = smul.addr %s331, 8
          %s333 = scalar_lea.vmem %s0, %s332
          %s334 = smul.u32 8, %s26
        $region44: #{bottleneck_forward.1} parent=39 // pred_fallthru
          _
        // Predicated region
        $region45: #{bottleneck_forward.1} parent=39 // pred_check
          %p335 = pneg %p88
        $region46: #{bottleneck_forward.1} parent=39 // pred_check_branch
          %337 = sbr.rel (%p335) target = $region48
        $region47: #{bottleneck_forward.1} parent=39 // pred_region
          %s338 = smul.u32 %s26, 8
          %s339 = ssub.s32 %s338, 1
          %p340 = scmp.gt.s32.totalorder %s339, 0
          %s341 = scalar_select %p340, %s339, 0
          %p342 = scmp.lt.s32.totalorder %s25, 1
          %s343 = scalar_select %p342, %s25, 1
          %p344 = scmp.lt.s32.totalorder %s341, 15
          %s345 = scalar_select %p344, %s341, 15
          %s346 = smul.addr %s345, 4
          %s347 = smul.addr %s343, 64
          %s348 = sadd.s32 %s346, %s347
          %s349 = smul.addr %s348, 8
          %s350 = scalar_lea.vmem %s1, %s349
          %s351 = smul.u32 %s26, 8
          %s352 = ssub.s32 %s351, 1
          %p353 = scmp.gt.s32.totalorder %s352, 0
          %s354 = scalar_select %p353, %s352, 0
        $region48: #{bottleneck_forward.1} parent=39 // pred_fallthru
          _
        // Predicated region
        $region49: #{bottleneck_forward.1} parent=39 // pred_check
          %p355 = pneg %p124
        $region50: #{bottleneck_forward.1} parent=39 // pred_check_branch
          %357 = sbr.rel (%p355) target = $region52
        $region51: #{bottleneck_forward.1} parent=39 // pred_region
          %s358 = sadd.s32 %s26, 1
          %s359 = smul.u32 %s358, 8
          %p360 = scmp.lt.s32.totalorder %s359, 15
          %s361 = scalar_select %p360, %s359, 15
          %p362 = scmp.lt.s32.totalorder %s25, 1
          %s363 = scalar_select %p362, %s25, 1
          %p364 = scmp.lt.s32.totalorder %s361, 15
          %s365 = scalar_select %p364, %s361, 15
          %s366 = smul.addr %s365, 4
          %s367 = smul.addr %s363, 64
          %s368 = sadd.s32 %s366, %s367
          %s369 = smul.addr %s368, 8
          %s370 = scalar_lea.vmem %s2, %s369
          %s371 = sadd.s32 %s26, 1
          %s372 = smul.u32 %s371, 8
          %p373 = scmp.lt.s32.totalorder %s372, 15
          %s374 = scalar_select %p373, %s372, 15
        $region52: #{bottleneck_forward.1} parent=39 // pred_fallthru
          _
      $region40: #{bottleneck_forward.1} parent=5 // pred_fallthru
        _
      %p375 = scmp.le.s32.totalorder 1, %s18
      %p376 = scmp.lt.s32.totalorder %s18, 5
      %p377 = pnand %p375, %p376
      %p378 = pneg %p377
      // Predicated region
      $region53: #{bottleneck_forward.1} parent=5 // pred_check
        _
      $region54: #{bottleneck_forward.1} parent=5 // pred_check_branch
        %380 = sbr.rel (%p377) target = $region56
      $region55: #{bottleneck_forward.1} parent=5 // pred_region
        %s381 = ssub.s32 %s18, 1
        %s382 = smul.u32 8, %s28
        %p383 = scmp.lt.s32.totalorder %s27, 1
        %s384 = scalar_select %p383, %s27, 1
        %p385 = scmp.lt.s32.totalorder %s382, 15
        %s386 = scalar_select %p385, %s382, 15
        %s387 = smul.addr %s386, 4
        %s388 = smul.addr %s384, 64
        %s389 = sadd.s32 %s387, %s388
        %s390 = smul.addr %s389, 8
        %s391 = scalar_lea.vmem %s0, %s390
        %p392 = pneg %p58
        %p393 = pneg %p55
        %s394 = smul.u32 %s28, 8
        %s395 = ssub.s32 %s394, 1
        %p396 = scmp.gt.s32.totalorder %s395, 0
        %s397 = scalar_select %p396, %s395, 0
        %p398 = scmp.lt.s32.totalorder %s27, 1
        %s399 = scalar_select %p398, %s27, 1
        %p400 = scmp.lt.s32.totalorder %s397, 15
        %s401 = scalar_select %p400, %s397, 15
        %s402 = smul.addr %s401, 4
        %s403 = smul.addr %s399, 64
        %s404 = sadd.s32 %s402, %s403
        %s405 = smul.addr %s404, 8
        %s406 = scalar_lea.vmem %s1, %s405
        %p407 = pneg %p94
        %p408 = pneg %p91
        %s409 = sadd.s32 %s28, 1
        %s410 = smul.u32 %s409, 8
        %p411 = scmp.lt.s32.totalorder %s410, 15
        %s412 = scalar_select %p411, %s410, 15
        %p413 = scmp.lt.s32.totalorder %s27, 1
        %s414 = scalar_select %p413, %s27, 1
        %p415 = scmp.lt.s32.totalorder %s412, 15
        %s416 = scalar_select %p415, %s412, 15
        %s417 = smul.addr %s416, 4
        %s418 = smul.addr %s414, 64
        %s419 = sadd.s32 %s417, %s418
        %s420 = smul.addr %s419, 8
        %s421 = scalar_lea.vmem %s2, %s420
        %p422 = pneg %p130
        %p423 = pneg %p127
        %p424 = pneg %p151
        %p425 = pneg %p148
        %p426 = pneg %p172
        %p427 = pneg %p169
        %p428 = pneg %p193
        %p429 = pneg %p190
        %p430 = pneg %p214
        %p431 = pneg %p211
        %p432 = pneg %p235
        %p433 = pneg %p232
        %p434 = pneg %p256
        %p435 = pneg %p253
        %p436 = pneg %p284
        %p437 = pneg %p281
        %s438 = sand.u32 %s271, 1
        %s439 = scalar_lea.sflag [#allocation4], %s438
        %s440 = sand.u32 %s271, 1
        %s441 = smul.addr %s440, 256
        %s442 = scalar_lea.vmem [#allocation3], %s441
        %s443 = smul.u32 8, %s28
        %p444 = scmp.lt.s32.totalorder %s27, 1
        %s445 = scalar_select %p444, %s27, 1
        %p446 = scmp.lt.s32.totalorder %s443, 15
        %s447 = scalar_select %p446, %s443, 15
        %s448 = smul.addr %s447, 4
        %s449 = smul.addr %s445, 64
        %s450 = sadd.s32 %s448, %s449
        %s451 = smul.addr %s450, 8
        %s452 = scalar_lea.vmem %s0, %s451
        %s453 = smul.u32 8, %s28
        %s454 = smul.u32 %s28, 8
        %s455 = ssub.s32 %s454, 1
        %p456 = scmp.gt.s32.totalorder %s455, 0
        %s457 = scalar_select %p456, %s455, 0
        %p458 = scmp.lt.s32.totalorder %s27, 1
        %s459 = scalar_select %p458, %s27, 1
        %p460 = scmp.lt.s32.totalorder %s457, 15
        %s461 = scalar_select %p460, %s457, 15
        %s462 = smul.addr %s461, 4
        %s463 = smul.addr %s459, 64
        %s464 = sadd.s32 %s462, %s463
        %s465 = smul.addr %s464, 8
        %s466 = scalar_lea.vmem %s1, %s465
        %s467 = smul.u32 %s28, 8
        %s468 = ssub.s32 %s467, 1
        %p469 = scmp.gt.s32.totalorder %s468, 0
        %s470 = scalar_select %p469, %s468, 0
        %s471 = sadd.s32 %s28, 1
        %s472 = smul.u32 %s471, 8
        %p473 = scmp.lt.s32.totalorder %s472, 15
        %s474 = scalar_select %p473, %s472, 15
        %p475 = scmp.lt.s32.totalorder %s27, 1
        %s476 = scalar_select %p475, %s27, 1
        %p477 = scmp.lt.s32.totalorder %s474, 15
        %s478 = scalar_select %p477, %s474, 15
        %s479 = smul.addr %s478, 4
        %s480 = smul.addr %s476, 64
        %s481 = sadd.s32 %s479, %s480
        %s482 = smul.addr %s481, 8
        %s483 = scalar_lea.vmem %s2, %s482
        %s484 = sadd.s32 %s28, 1
        %s485 = smul.u32 %s484, 8
        %p486 = scmp.lt.s32.totalorder %s485, 15
        %s487 = scalar_select %p486, %s485, 15
        %s488 = smul.u32 8, %s28
        %v490 = vld [vmem:[%s3] sm:$0xf]
        %v491 = vld [vmem:[%s3 + $0x4] sm:$0xf]
        %v492 = vld [vmem:[%s3 + $0x8] sm:$0xf]
        %v493 = vld [vmem:[%s3 + $0xc] sm:$0xf]
        %v494 = vld [vmem:[%s3 + $0x10] sm:$0xf]
        %v495 = vld [vmem:[%s3 + $0x14] sm:$0xf]
        %v496 = vld [vmem:[%s3 + $0x18] sm:$0xf]
        %v497 = vld [vmem:[%s3 + $0x1c] sm:$0xf]
        %v498 = vld [vmem:[%s3 + $0x20] sm:$0xf]
        %v499 = vld [vmem:[%s3 + $0x24] sm:$0xf]
        %v500 = vld [vmem:[%s3 + $0x28] sm:$0xf]
        %v501 = vld [vmem:[%s3 + $0x2c] sm:$0xf]
        %v502 = vld [vmem:[%s3 + $0x30] sm:$0xf]
        %v503 = vld [vmem:[%s3 + $0x34] sm:$0xf]
        %v504 = vld [vmem:[%s3 + $0x38] sm:$0xf]
        %v505 = vld [vmem:[%s3 + $0x3c] sm:$0xf]
        %v506 = vld [vmem:[%s3 + $0x40] sm:$0xf]
        %v507 = vld [vmem:[%s3 + $0x44] sm:$0xf]
        %v508 = vld [vmem:[%s3 + $0x48] sm:$0xf]
        %v509 = vld [vmem:[%s3 + $0x4c] sm:$0xf]
        %v510 = vld [vmem:[%s3 + $0x50] sm:$0xf]
        %v511 = vld [vmem:[%s3 + $0x54] sm:$0xf]
        %v512 = vld [vmem:[%s3 + $0x58] sm:$0xf]
        %v513 = vld [vmem:[%s3 + $0x5c] sm:$0xf]
        %v514 = vld [vmem:[%s3 + $0x60] sm:$0xf]
        %v515 = vld [vmem:[%s3 + $0x64] sm:$0xf]
        %v516 = vld [vmem:[%s3 + $0x68] sm:$0xf]
        %v517 = vld [vmem:[%s3 + $0x6c] sm:$0xf]
        %v518 = vld [vmem:[%s3 + $0x70] sm:$0xf]
        %v519 = vld [vmem:[%s3 + $0x74] sm:$0xf]
        %v520 = vld [vmem:[%s3 + $0x78] sm:$0xf]
        %v521 = vld [vmem:[%s3 + $0x7c] sm:$0xf]
        %v522 = vld [vmem:[%s4] sm:$0x1]
        %v523 = vld [vmem:[%s452] sm:$0xff]
        %v524 = vld [vmem:[%s452 + $0x8] sm:$0xff]
        %v525 = vld [vmem:[%s452 + $0x10] sm:$0xff]
        %v526 = vld [vmem:[%s452 + $0x18] sm:$0xff]
        %v527 = vld [vmem:[%s452 + $0x20] sm:$0xff]
        %v528 = vld [vmem:[%s452 + $0x28] sm:$0xff]
        %v529 = vld [vmem:[%s452 + $0x30] sm:$0xff]
        %v530 = vld [vmem:[%s452 + $0x38] sm:$0xff]
        %v531 = vld [vmem:[%s452 + $0x40] sm:$0xff]
        %v532 = vld [vmem:[%s452 + $0x48] sm:$0xff]
        %v533 = vld [vmem:[%s452 + $0x50] sm:$0xff]
        %v534 = vld [vmem:[%s452 + $0x58] sm:$0xff]
        %v535 = vld [vmem:[%s452 + $0x60] sm:$0xff]
        %v536 = vld [vmem:[%s452 + $0x68] sm:$0xff]
        %v537 = vld [vmem:[%s452 + $0x70] sm:$0xff]
        %v538 = vld [vmem:[%s452 + $0x78] sm:$0xff]
        %v539 = vld [vmem:[%s452 + $0x80] sm:$0xff]
        %v540 = vld [vmem:[%s452 + $0x88] sm:$0xff]
        %v541 = vld [vmem:[%s452 + $0x90] sm:$0xff]
        %v542 = vld [vmem:[%s452 + $0x98] sm:$0xff]
        %v543 = vld [vmem:[%s452 + $0xa0] sm:$0xff]
        %v544 = vld [vmem:[%s452 + $0xa8] sm:$0xff]
        %v545 = vld [vmem:[%s452 + $0xb0] sm:$0xff]
        %v546 = vld [vmem:[%s452 + $0xb8] sm:$0xff]
        %v547 = vld [vmem:[%s452 + $0xc0] sm:$0xff]
        %v548 = vld [vmem:[%s452 + $0xc8] sm:$0xff]
        %v549 = vld [vmem:[%s452 + $0xd0] sm:$0xff]
        %v550 = vld [vmem:[%s452 + $0xd8] sm:$0xff]
        %v551 = vld [vmem:[%s452 + $0xe0] sm:$0xff]
        %v552 = vld [vmem:[%s452 + $0xe8] sm:$0xff]
        %v553 = vld [vmem:[%s452 + $0xf0] sm:$0xff]
        %v554 = vld [vmem:[%s452 + $0xf8] sm:$0xff]
        %v555 = vpack.c.bf16 %v525, %v523
        %v556 = vpack.c.bf16 %v526, %v524
        %v557 = vpack.c.bf16 %v529, %v527
        %v558 = vpack.c.bf16 %v530, %v528
        %v559 = vpack.c.bf16 %v533, %v531
        %v560 = vpack.c.bf16 %v534, %v532
        %v561 = vpack.c.bf16 %v537, %v535
        %v562 = vpack.c.bf16 %v538, %v536
        %v563 = vpack.c.bf16 %v541, %v539
        %v564 = vpack.c.bf16 %v542, %v540
        %v565 = vpack.c.bf16 %v545, %v543
        %v566 = vpack.c.bf16 %v546, %v544
        %v567 = vpack.c.bf16 %v549, %v547
        %v568 = vpack.c.bf16 %v550, %v548
        %v569 = vpack.c.bf16 %v553, %v551
        %v570 = vpack.c.bf16 %v554, %v552
        %v572 = vlaneseq
        %v573 = vshrl.u32 %v572, 7
        %v574 = vsub.s32 0, %v573
        %v575 = vrot.slane %v522, %v574
        %v609 = vunpack.c.l.b16 %v490
        %v610 = vunpack.c.l.b16 %v491
        %v611 = vunpack.c.l.b16 %v492
        %v612 = vunpack.c.l.b16 %v493
        %v613 = vunpack.c.l.b16 %v494
        %v614 = vunpack.c.l.b16 %v495
        %v615 = vunpack.c.l.b16 %v496
        %v616 = vunpack.c.l.b16 %v497
        %v617 = vunpack.c.l.b16 %v498
        %v618 = vunpack.c.l.b16 %v499
        %v619 = vunpack.c.l.b16 %v500
        %v620 = vunpack.c.l.b16 %v501
        %v621 = vunpack.c.l.b16 %v502
        %v622 = vunpack.c.l.b16 %v503
        %v623 = vunpack.c.l.b16 %v504
        %v624 = vunpack.c.l.b16 %v505
        %v625 = vunpack.c.l.b16 %v506
        %v626 = vunpack.c.l.b16 %v507
        %v627 = vunpack.c.l.b16 %v508
        %v628 = vunpack.c.l.b16 %v509
        %v629 = vunpack.c.l.b16 %v510
        %v630 = vunpack.c.l.b16 %v511
        %v631 = vunpack.c.l.b16 %v512
        %v632 = vunpack.c.l.b16 %v513
        %v633 = vunpack.c.l.b16 %v514
        %v634 = vunpack.c.l.b16 %v515
        %v635 = vunpack.c.l.b16 %v516
        %v636 = vunpack.c.l.b16 %v517
        %v637 = vunpack.c.l.b16 %v518
        %v638 = vunpack.c.l.b16 %v519
        %v639 = vunpack.c.l.b16 %v520
        %v640 = vunpack.c.l.b16 %v521
        %v641 = vpack.c.b16 %v610, %v609
        %v642 = vpack.c.b16 %v612, %v611
        %v643 = vpack.c.b16 %v614, %v613
        %v644 = vpack.c.b16 %v616, %v615
        %v645 = vpack.c.b16 %v618, %v617
        %v646 = vpack.c.b16 %v620, %v619
        %v647 = vpack.c.b16 %v622, %v621
        %v648 = vpack.c.b16 %v624, %v623
        %v649 = vpack.c.b16 %v626, %v625
        %v650 = vpack.c.b16 %v628, %v627
        %v651 = vpack.c.b16 %v630, %v629
        %v652 = vpack.c.b16 %v632, %v631
        %v653 = vpack.c.b16 %v634, %v633
        %v654 = vpack.c.b16 %v636, %v635
        %v655 = vpack.c.b16 %v638, %v637
        %v656 = vpack.c.b16 %v640, %v639
        %673 = vmatprep.subr.bf16.mxu0 0
        %674 = vmatpush1.bf16.msra.mxu0 %v641
        %675 = vmatprep.subr.bf16.mxu0 0
        %676 = vmatpush1.bf16.msra.mxu0 %v642
        %677 = vmatprep.subr.bf16.mxu0 0
        %678 = vmatpush1.bf16.msra.mxu0 %v643
        %679 = vmatprep.subr.bf16.mxu0 0
        %680 = vmatpush1.bf16.msra.mxu0 %v644
        %681 = vmatprep.subr.bf16.mxu0 0
        %682 = vmatpush1.bf16.msra.mxu0 %v645
        %683 = vmatprep.subr.bf16.mxu0 0
        %684 = vmatpush1.bf16.msra.mxu0 %v646
        %685 = vmatprep.subr.bf16.mxu0 0
        %686 = vmatpush1.bf16.msra.mxu0 %v647
        %687 = vmatprep.subr.bf16.mxu0 0
        %688 = vmatpush1.bf16.msra.mxu0 %v648
        %689 = vmatprep.subr.bf16.mxu0 0
        %690 = vmatpush1.bf16.msra.mxu0 %v649
        %691 = vmatprep.subr.bf16.mxu0 0
        %692 = vmatpush1.bf16.msra.mxu0 %v650
        %693 = vmatprep.subr.bf16.mxu0 0
        %694 = vmatpush1.bf16.msra.mxu0 %v651
        %695 = vmatprep.subr.bf16.mxu0 0
        %696 = vmatpush1.bf16.msra.mxu0 %v652
        %697 = vmatprep.subr.bf16.mxu0 0
        %698 = vmatpush1.bf16.msra.mxu0 %v653
        %699 = vmatprep.subr.bf16.mxu0 0
        %700 = vmatpush1.bf16.msra.mxu0 %v654
        %701 = vmatprep.subr.bf16.mxu0 0
        %702 = vmatpush1.bf16.msra.mxu0 %v655
        %703 = vmatprep.subr.bf16.mxu0 0
        %704 = vmatpush1.bf16.msra.mxu0 %v656
        %705 = vmatprep.mubr.bf16.mxu0 %v556
        %706 = vmatmul.mubr.bf16.gmra.mrb[0].mxu0 %v555
        %v707 = vpop.f32.mrb[0].mxu0
        %v708 = vadd.f32 %v575, %v707
        %v709 = vpop.f32.mrb[0].mxu0
        %v710 = vpop.f32.mrb[0].mxu0
        %v711 = vadd.f32 %v575, %v710
        %v712 = vpop.f32.mrb[0].mxu0
        %713 = vmatprep.mubr.bf16.mxu0 %v558
        %714 = vmatmul.mubr.bf16.gmra.mrb[0].mxu0 %v557
        %v715 = vpop.f32.mrb[0].mxu0
        %v716 = vadd.f32 %v575, %v715
        %v717 = vpop.f32.mrb[0].mxu0
        %v718 = vpop.f32.mrb[0].mxu0
        %v719 = vadd.f32 %v575, %v718
        %v720 = vpop.f32.mrb[0].mxu0
        %721 = vmatprep.mubr.bf16.mxu0 %v560
        %722 = vmatmul.mubr.bf16.gmra.mrb[0].mxu0 %v559
        %v723 = vpop.f32.mrb[0].mxu0
        %v724 = vadd.f32 %v575, %v723
        %v725 = vpop.f32.mrb[0].mxu0
        %v726 = vpop.f32.mrb[0].mxu0
        %v727 = vadd.f32 %v575, %v726
        %v728 = vpop.f32.mrb[0].mxu0
        %729 = vmatprep.mubr.bf16.mxu0 %v562
        %730 = vmatmul.mubr.bf16.gmra.mrb[0].mxu0 %v561
        %v731 = vpop.f32.mrb[0].mxu0
        %v732 = vadd.f32 %v575, %v731
        %v733 = vpop.f32.mrb[0].mxu0
        %v734 = vpop.f32.mrb[0].mxu0
        %v735 = vadd.f32 %v575, %v734
        %v736 = vpop.f32.mrb[0].mxu0
        %737 = vmatprep.mubr.bf16.mxu0 %v564
        %738 = vmatmul.mubr.bf16.gmra.mrb[0].mxu0 %v563
        %v739 = vpop.f32.mrb[0].mxu0
        %v740 = vadd.f32 %v575, %v739
        %v741 = vpop.f32.mrb[0].mxu0
        %v742 = vpop.f32.mrb[0].mxu0
        %v743 = vadd.f32 %v575, %v742
        %v744 = vpop.f32.mrb[0].mxu0
        %745 = vmatprep.mubr.bf16.mxu0 %v566
        %746 = vmatmul.mubr.bf16.gmra.mrb[0].mxu0 %v565
        %v747 = vpop.f32.mrb[0].mxu0
        %v748 = vadd.f32 %v575, %v747
        %v749 = vpop.f32.mrb[0].mxu0
        %v750 = vpop.f32.mrb[0].mxu0
        %v751 = vadd.f32 %v575, %v750
        %v752 = vpop.f32.mrb[0].mxu0
        %753 = vmatprep.mubr.bf16.mxu0 %v568
        %754 = vmatmul.mubr.bf16.gmra.mrb[0].mxu0 %v567
        %v755 = vpop.f32.mrb[0].mxu0
        %v756 = vadd.f32 %v575, %v755
        %v757 = vpop.f32.mrb[0].mxu0
        %v758 = vpop.f32.mrb[0].mxu0
        %v759 = vadd.f32 %v575, %v758
        %v760 = vpop.f32.mrb[0].mxu0
        %761 = vmatprep.mubr.bf16.mxu0 %v570
        %762 = vmatmul.mubr.bf16.gmra.mrb[0].mxu0 %v569
        %v763 = vpop.f32.mrb[0].mxu0
        %v764 = vadd.f32 %v575, %v763
        %v765 = vpop.f32.mrb[0].mxu0
        %v766 = vpop.f32.mrb[0].mxu0
        %v767 = vadd.f32 %v575, %v766
        %v768 = vpop.f32.mrb[0].mxu0
        %769 = vdwg.mxu0
        %v770 = vmax.f32 %v708, 0.0
        %v771 = vmax.f32 %v711, 0.0
        %v772 = vmax.f32 %v716, 0.0
        %v773 = vmax.f32 %v719, 0.0
        %v774 = vmax.f32 %v724, 0.0
        %v775 = vmax.f32 %v727, 0.0
        %v776 = vmax.f32 %v732, 0.0
        %v777 = vmax.f32 %v735, 0.0
        %v778 = vmax.f32 %v740, 0.0
        %v779 = vmax.f32 %v743, 0.0
        %v780 = vmax.f32 %v748, 0.0
        %v781 = vmax.f32 %v751, 0.0
        %v782 = vmax.f32 %v756, 0.0
        %v783 = vmax.f32 %v759, 0.0
        %v784 = vmax.f32 %v764, 0.0
        %v785 = vmax.f32 %v767, 0.0
        %v786 = vpack.c.bf16 %v771, %v770
        %v787 = vpack.c.bf16 %v773, %v772
        %v788 = vpack.c.bf16 %v775, %v774
        %v789 = vpack.c.bf16 %v777, %v776
        %v790 = vpack.c.bf16 %v779, %v778
        %v791 = vpack.c.bf16 %v781, %v780
        %v792 = vpack.c.bf16 %v783, %v782
        %v793 = vpack.c.bf16 %v785, %v784
        %v795 = vshrl.u32 %v786, 16
        %v797 = vrot.slane %v795, 7
        %v798 = vshll.u32 %v786, 16
        %v800 = vor.u32 %v797, %v798
        %v802 = vshrl.u32 %v787, 16
        %v804 = vrot.slane %v802, 7
        %v805 = vshll.u32 %v787, 16
        %v807 = vor.u32 %v804, %v805
        %v809 = vshrl.u32 %v788, 16
        %v811 = vrot.slane %v809, 7
        %v812 = vshll.u32 %v788, 16
        %v814 = vor.u32 %v811, %v812
        %v816 = vshrl.u32 %v789, 16
        %v818 = vrot.slane %v816, 7
        %v819 = vshll.u32 %v789, 16
        %v821 = vor.u32 %v818, %v819
        %v823 = vshrl.u32 %v790, 16
        %v825 = vrot.slane %v823, 7
        %v826 = vshll.u32 %v790, 16
        %v828 = vor.u32 %v825, %v826
        %v830 = vshrl.u32 %v791, 16
        %v832 = vrot.slane %v830, 7
        %v833 = vshll.u32 %v791, 16
        %v835 = vor.u32 %v832, %v833
        %v837 = vshrl.u32 %v792, 16
        %v839 = vrot.slane %v837, 7
        %v840 = vshll.u32 %v792, 16
        %v842 = vor.u32 %v839, %v840
        %v844 = vshrl.u32 %v793, 16
        %v846 = vrot.slane %v844, 7
        %v847 = vshll.u32 %v793, 16
        %v849 = vor.u32 %v846, %v847
        %s866 = scalar_lea.vmem [#allocation2], 16
        %vm867 = vcmask 523264
        %vm868 = vsmask.f32 7938
        %vm869 = vmand %vm867, %vm868
        %v870 = vld [vmem:[%s866] sm:$0xff]
        %v871 = vsel %vm869, %v800, %v870
        %872 = vst [vmem:[%s866] sm:$0xff] %v871
        %vm873 = vcmask 516096
        %vm874 = vsmask.f32 256
        %vm875 = vmand %vm873, %vm874
        %v876 = vld [vmem:[%s866 + $0x8] sm:$0x1]
        %v877 = vsel %vm875, %v797, %v876
        %878 = vst [vmem:[%s866 + $0x8] sm:$0x1] %v877
        %v879 = vld [vmem:[%s866 + $0x10] sm:$0xff]
        %v880 = vsel %vm869, %v807, %v879
        %881 = vst [vmem:[%s866 + $0x10] sm:$0xff] %v880
        %v882 = vld [vmem:[%s866 + $0x18] sm:$0x1]
        %v883 = vsel %vm875, %v804, %v882
        %884 = vst [vmem:[%s866 + $0x18] sm:$0x1] %v883
        %v885 = vld [vmem:[%s866 + $0x20] sm:$0xff]
        %v886 = vsel %vm869, %v814, %v885
        %887 = vst [vmem:[%s866 + $0x20] sm:$0xff] %v886
        %v888 = vld [vmem:[%s866 + $0x28] sm:$0x1]
        %v889 = vsel %vm875, %v811, %v888
        %890 = vst [vmem:[%s866 + $0x28] sm:$0x1] %v889
        %v891 = vld [vmem:[%s866 + $0x30] sm:$0xff]
        %v892 = vsel %vm869, %v821, %v891
        %893 = vst [vmem:[%s866 + $0x30] sm:$0xff] %v892
        %v894 = vld [vmem:[%s866 + $0x38] sm:$0x1]
        %v895 = vsel %vm875, %v818, %v894
        %896 = vst [vmem:[%s866 + $0x38] sm:$0x1] %v895
        %v897 = vld [vmem:[%s866 + $0x40] sm:$0xff]
        %v898 = vsel %vm869, %v828, %v897
        %899 = vst [vmem:[%s866 + $0x40] sm:$0xff] %v898
        %v900 = vld [vmem:[%s866 + $0x48] sm:$0x1]
        %v901 = vsel %vm875, %v825, %v900
        %902 = vst [vmem:[%s866 + $0x48] sm:$0x1] %v901
        %v903 = vld [vmem:[%s866 + $0x50] sm:$0xff]
        %v904 = vsel %vm869, %v835, %v903
        %905 = vst [vmem:[%s866 + $0x50] sm:$0xff] %v904
        %v906 = vld [vmem:[%s866 + $0x58] sm:$0x1]
        %v907 = vsel %vm875, %v832, %v906
        %908 = vst [vmem:[%s866 + $0x58] sm:$0x1] %v907
        %v909 = vld [vmem:[%s866 + $0x60] sm:$0xff]
        %v910 = vsel %vm869, %v842, %v909
        %911 = vst [vmem:[%s866 + $0x60] sm:$0xff] %v910
        %v912 = vld [vmem:[%s866 + $0x68] sm:$0x1]
        %v913 = vsel %vm875, %v839, %v912
        %914 = vst [vmem:[%s866 + $0x68] sm:$0x1] %v913
        %v915 = vld [vmem:[%s866 + $0x70] sm:$0xff]
        %v916 = vsel %vm869, %v849, %v915
        %917 = vst [vmem:[%s866 + $0x70] sm:$0xff] %v916
        %v918 = vld [vmem:[%s866 + $0x78] sm:$0x1]
        %v919 = vsel %vm875, %v846, %v918
        %920 = vst [vmem:[%s866 + $0x78] sm:$0x1] %v919
        %p921 = scmp.gt.s32.totalorder %s28, 0
        %v922 = vld [vmem:[%s466] sm:$0xff]
        %v923 = vld [vmem:[%s466 + $0x8] sm:$0xff]
        %v924 = vld [vmem:[%s466 + $0x10] sm:$0xff]
        %v925 = vld [vmem:[%s466 + $0x18] sm:$0xff]
        %v926 = vpack.c.bf16 %v924, %v922
        %v927 = vpack.c.bf16 %v925, %v923
        %928 = vmatprep.subr.bf16.mxu0 0
        %929 = vmatpush1.bf16.msra.mxu0 %v641
        %930 = vmatprep.subr.bf16.mxu0 0
        %931 = vmatpush1.bf16.msra.mxu0 %v642
        %932 = vmatprep.subr.bf16.mxu0 0
        %933 = vmatpush1.bf16.msra.mxu0 %v643
        %934 = vmatprep.subr.bf16.mxu0 0
        %935 = vmatpush1.bf16.msra.mxu0 %v644
        %936 = vmatprep.subr.bf16.mxu0 0
        %937 = vmatpush1.bf16.msra.mxu0 %v645
        %938 = vmatprep.subr.bf16.mxu0 0
        %939 = vmatpush1.bf16.msra.mxu0 %v646
        %940 = vmatprep.subr.bf16.mxu0 0
        %941 = vmatpush1.bf16.msra.mxu0 %v647
        %942 = vmatprep.subr.bf16.mxu0 0
        %943 = vmatpush1.bf16.msra.mxu0 %v648
        %944 = vmatprep.subr.bf16.mxu0 0
        %945 = vmatpush1.bf16.msra.mxu0 %v649
        %946 = vmatprep.subr.bf16.mxu0 0
        %947 = vmatpush1.bf16.msra.mxu0 %v650
        %948 = vmatprep.subr.bf16.mxu0 0
        %949 = vmatpush1.bf16.msra.mxu0 %v651
        %950 = vmatprep.subr.bf16.mxu0 0
        %951 = vmatpush1.bf16.msra.mxu0 %v652
        %952 = vmatprep.subr.bf16.mxu0 0
        %953 = vmatpush1.bf16.msra.mxu0 %v653
        %954 = vmatprep.subr.bf16.mxu0 0
        %955 = vmatpush1.bf16.msra.mxu0 %v654
        %956 = vmatprep.subr.bf16.mxu0 0
        %957 = vmatpush1.bf16.msra.mxu0 %v655
        %958 = vmatprep.subr.bf16.mxu0 0
        %959 = vmatpush1.bf16.msra.mxu0 %v656
        %960 = vmatprep.mubr.bf16.mxu0 %v927
        %961 = vmatmul.mubr.bf16.gmra.mrb[0].mxu0 %v926
        %v962 = vpop.f32.mrb[0].mxu0
        %v963 = vadd.f32 %v575, %v962
        %v964 = vpop.f32.mrb[0].mxu0
        %v965 = vpop.f32.mrb[0].mxu0
        %v966 = vadd.f32 %v575, %v965
        %v967 = vpop.f32.mrb[0].mxu0
        %968 = vdwg.mxu0
        %v969 = vmax.f32 %v963, 0.0
        %v970 = vmax.f32 %v966, 0.0
        %s971 = scalar_select %p921, 1, 0
        %s972 = scvt.s32.f32 %s971
        %v973 = vstv %s972
        %v974 = vmul.f32 %v969, %v973
        %v975 = vmul.f32 %v970, %v973
        %v976 = vpack.c.bf16 %v975, %v974
        %v978 = vshrl.u32 %v976, 16
        %v980 = vrot.slane %v978, 7
        %v981 = vshll.u32 %v976, 16
        %v983 = vor.u32 %v980, %v981
        %v986 = vld [vmem:[#allocation2] sm:$0xff]
        %v987 = vsel %vm869, %v983, %v986
        %988 = vst [vmem:[#allocation2] sm:$0xff] %v987
        %v989 = vld [vmem:[#allocation2 + $0x8] sm:$0x1]
        %v990 = vsel %vm875, %v980, %v989
        %991 = vst [vmem:[#allocation2 + $0x8] sm:$0x1] %v990
        %p992 = scmp.lt.s32.totalorder %s28, 1
        %v993 = vld [vmem:[%s483] sm:$0xff]
        %v994 = vld [vmem:[%s483 + $0x8] sm:$0xff]
        %v995 = vld [vmem:[%s483 + $0x10] sm:$0xff]
        %v996 = vld [vmem:[%s483 + $0x18] sm:$0xff]
        %v997 = vpack.c.bf16 %v995, %v993
        %v998 = vpack.c.bf16 %v996, %v994
        %999 = vmatprep.subr.bf16.mxu0 0
        %1000 = vmatpush1.bf16.msra.mxu0 %v641
        %1001 = vmatprep.subr.bf16.mxu0 0
        %1002 = vmatpush1.bf16.msra.mxu0 %v642
        %1003 = vmatprep.subr.bf16.mxu0 0
        %1004 = vmatpush1.bf16.msra.mxu0 %v643
        %1005 = vmatprep.subr.bf16.mxu0 0
        %1006 = vmatpush1.bf16.msra.mxu0 %v644
        %1007 = vmatprep.subr.bf16.mxu0 0
        %1008 = vmatpush1.bf16.msra.mxu0 %v645
        %1009 = vmatprep.subr.bf16.mxu0 0
        %1010 = vmatpush1.bf16.msra.mxu0 %v646
        %1011 = vmatprep.subr.bf16.mxu0 0
        %1012 = vmatpush1.bf16.msra.mxu0 %v647
        %1013 = vmatprep.subr.bf16.mxu0 0
        %1014 = vmatpush1.bf16.msra.mxu0 %v648
        %1015 = vmatprep.subr.bf16.mxu0 0
        %1016 = vmatpush1.bf16.msra.mxu0 %v649
        %1017 = vmatprep.subr.bf16.mxu0 0
        %1018 = vmatpush1.bf16.msra.mxu0 %v650
        %1019 = vmatprep.subr.bf16.mxu0 0
        %1020 = vmatpush1.bf16.msra.mxu0 %v651
        %1021 = vmatprep.subr.bf16.mxu0 0
        %1022 = vmatpush1.bf16.msra.mxu0 %v652
        %1023 = vmatprep.subr.bf16.mxu0 0
        %1024 = vmatpush1.bf16.msra.mxu0 %v653
        %1025 = vmatprep.subr.bf16.mxu0 0
        %1026 = vmatpush1.bf16.msra.mxu0 %v654
        %1027 = vmatprep.subr.bf16.mxu0 0
        %1028 = vmatpush1.bf16.msra.mxu0 %v655
        %1029 = vmatprep.subr.bf16.mxu0 0
        %1030 = vmatpush1.bf16.msra.mxu0 %v656
        %1031 = vmatprep.mubr.bf16.mxu0 %v998
        %1032 = vmatmul.mubr.bf16.gmra.mrb[0].mxu0 %v997
        %v1033 = vpop.f32.mrb[0].mxu0
        %v1034 = vadd.f32 %v575, %v1033
        %v1035 = vpop.f32.mrb[0].mxu0
        %v1036 = vpop.f32.mrb[0].mxu0
        %v1037 = vadd.f32 %v575, %v1036
        %v1038 = vpop.f32.mrb[0].mxu0
        %1039 = vdwg.mxu0
        %v1040 = vmax.f32 %v1034, 0.0
        %v1041 = vmax.f32 %v1037, 0.0
        %s1042 = scalar_select %p992, 1, 0
        %s1043 = scvt.s32.f32 %s1042
        %v1044 = vstv %s1043
        %v1045 = vmul.f32 %v1040, %v1044
        %v1046 = vmul.f32 %v1041, %v1044
        %v1047 = vpack.c.bf16 %v1046, %v1045
        %v1049 = vshrl.u32 %v1047, 16
        %v1051 = vrot.slane %v1049, 7
        %v1052 = vshll.u32 %v1047, 16
        %v1054 = vor.u32 %v1051, %v1052
        %s1057 = scalar_lea.vmem [#allocation2], 144
        %v1058 = vld [vmem:[%s1057] sm:$0xff]
        %v1059 = vsel %vm869, %v1054, %v1058
        %1060 = vst [vmem:[%s1057] sm:$0xff] %v1059
        %v1061 = vld [vmem:[%s1057 + $0x8] sm:$0x1]
        %v1062 = vsel %vm875, %v1051, %v1061
        %1063 = vst [vmem:[%s1057 + $0x8] sm:$0x1] %v1062
        %v1064 = vld [vmem:[#allocation2] sm:$0x1]
        %v1065 = vsel %vm875, 0, %v1064
        %1066 = vst [vmem:[#allocation2] sm:$0x1] %v1065
        %v1067 = vld [vmem:[#allocation2 + $0x10] sm:$0x1]
        %v1068 = vsel %vm875, 0, %v1067
        %1069 = vst [vmem:[#allocation2 + $0x10] sm:$0x1] %v1068
        %v1070 = vld [vmem:[#allocation2 + $0x20] sm:$0x1]
        %v1071 = vsel %vm875, 0, %v1070
        %1072 = vst [vmem:[#allocation2 + $0x20] sm:$0x1] %v1071
        %v1073 = vld [vmem:[#allocation2 + $0x30] sm:$0x1]
        %v1074 = vsel %vm875, 0, %v1073
        %1075 = vst [vmem:[#allocation2 + $0x30] sm:$0x1] %v1074
        %v1076 = vld [vmem:[#allocation2 + $0x40] sm:$0x1]
        %v1077 = vsel %vm875, 0, %v1076
        %1078 = vst [vmem:[#allocation2 + $0x40] sm:$0x1] %v1077
        %v1079 = vld [vmem:[#allocation2 + $0x50] sm:$0x1]
        %v1080 = vsel %vm875, 0, %v1079
        %1081 = vst [vmem:[#allocation2 + $0x50] sm:$0x1] %v1080
        %v1082 = vld [vmem:[#allocation2 + $0x60] sm:$0x1]
        %v1083 = vsel %vm875, 0, %v1082
        %1084 = vst [vmem:[#allocation2 + $0x60] sm:$0x1] %v1083
        %v1085 = vld [vmem:[#allocation2 + $0x70] sm:$0x1]
        %v1086 = vsel %vm875, 0, %v1085
        %1087 = vst [vmem:[#allocation2 + $0x70] sm:$0x1] %v1086
        %v1088 = vld [vmem:[#allocation2 + $0x80] sm:$0x1]
        %v1089 = vsel %vm875, 0, %v1088
        %1090 = vst [vmem:[#allocation2 + $0x80] sm:$0x1] %v1089
        %v1091 = vld [vmem:[#allocation2 + $0x90] sm:$0x1]
        %v1092 = vsel %vm875, 0, %v1091
        %1093 = vst [vmem:[#allocation2 + $0x90] sm:$0x1] %v1092
        %vm1094 = vmand %vm873, %vm868
        %v1095 = vld [vmem:[#allocation2 + $0x8] sm:$0x1]
        %v1096 = vsel %vm1094, 0, %v1095
        %1097 = vst [vmem:[#allocation2 + $0x8] sm:$0x1] %v1096
        %v1098 = vld [vmem:[#allocation2 + $0x18] sm:$0x1]
        %v1099 = vsel %vm1094, 0, %v1098
        %1100 = vst [vmem:[#allocation2 + $0x18] sm:$0x1] %v1099
        %v1101 = vld [vmem:[#allocation2 + $0x28] sm:$0x1]
        %v1102 = vsel %vm1094, 0, %v1101
        %1103 = vst [vmem:[#allocation2 + $0x28] sm:$0x1] %v1102
        %v1104 = vld [vmem:[#allocation2 + $0x38] sm:$0x1]
        %v1105 = vsel %vm1094, 0, %v1104
        %1106 = vst [vmem:[#allocation2 + $0x38] sm:$0x1] %v1105
        %v1107 = vld [vmem:[#allocation2 + $0x48] sm:$0x1]
        %v1108 = vsel %vm1094, 0, %v1107
        %1109 = vst [vmem:[#allocation2 + $0x48] sm:$0x1] %v1108
        %v1110 = vld [vmem:[#allocation2 + $0x58] sm:$0x1]
        %v1111 = vsel %vm1094, 0, %v1110
        %1112 = vst [vmem:[#allocation2 + $0x58] sm:$0x1] %v1111
        %v1113 = vld [vmem:[#allocation2 + $0x68] sm:$0x1]
        %v1114 = vsel %vm1094, 0, %v1113
        %1115 = vst [vmem:[#allocation2 + $0x68] sm:$0x1] %v1114
        %v1116 = vld [vmem:[#allocation2 + $0x78] sm:$0x1]
        %v1117 = vsel %vm1094, 0, %v1116
        %1118 = vst [vmem:[#allocation2 + $0x78] sm:$0x1] %v1117
        %v1119 = vld [vmem:[#allocation2 + $0x88] sm:$0x1]
        %v1120 = vsel %vm1094, 0, %v1119
        %1121 = vst [vmem:[#allocation2 + $0x88] sm:$0x1] %v1120
        %v1122 = vld [vmem:[#allocation2 + $0x98] sm:$0x1]
        %v1123 = vsel %vm1094, 0, %v1122
        %1124 = vst [vmem:[#allocation2 + $0x98] sm:$0x1] %v1123
        %v1125 = vld [vmem:[#allocation2] sm:$0xff]
        %v1126 = vld [vmem:[#allocation2 + $0x10] sm:$0xff]
        %v1127 = vld [vmem:[#allocation2 + $0x20] sm:$0xff]
        %v1128 = vld [vmem:[#allocation2 + $0x30] sm:$0xff]
        %v1129 = vld [vmem:[#allocation2 + $0x40] sm:$0xff]
        %v1130 = vld [vmem:[#allocation2 + $0x50] sm:$0xff]
        %v1131 = vld [vmem:[#allocation2 + $0x60] sm:$0xff]
        %v1132 = vld [vmem:[#allocation2 + $0x70] sm:$0xff]
        %v1133 = vld [vmem:[#allocation2 + $0x8] sm:$0x1]
        %v1134 = vld [vmem:[#allocation2 + $0x18] sm:$0x1]
        %v1135 = vld [vmem:[#allocation2 + $0x28] sm:$0x1]
        %v1136 = vld [vmem:[#allocation2 + $0x38] sm:$0x1]
        %v1137 = vld [vmem:[#allocation2 + $0x48] sm:$0x1]
        %v1138 = vld [vmem:[#allocation2 + $0x58] sm:$0x1]
        %v1139 = vld [vmem:[#allocation2 + $0x68] sm:$0x1]
        %v1140 = vld [vmem:[#allocation2 + $0x78] sm:$0x1]
        %vm1141 = vsmask.f32 7424
        %v1143 = vshrl.u32 %v1125, 16
        %v1145 = vshll.u32 %v1125, 16
        %v1147 = vrot.slane %v1145, 1
        %v1148 = vor.u32 %v1143, %v1147
        %v1150 = vshll.u32 %v1133, 16
        %v1152 = vrot.slane %v1150, 1
        %v1153 = vsel %vm1141, %v1148, %v1152
        %v1155 = vshrl.u32 %v1126, 16
        %v1157 = vshll.u32 %v1126, 16
        %v1159 = vrot.slane %v1157, 1
        %v1160 = vor.u32 %v1155, %v1159
        %v1162 = vshll.u32 %v1134, 16
        %v1164 = vrot.slane %v1162, 1
        %v1165 = vsel %vm1141, %v1160, %v1164
        %v1167 = vshrl.u32 %v1127, 16
        %v1169 = vshll.u32 %v1127, 16
        %v1171 = vrot.slane %v1169, 1
        %v1172 = vor.u32 %v1167, %v1171
        %v1174 = vshll.u32 %v1135, 16
        %v1176 = vrot.slane %v1174, 1
        %v1177 = vsel %vm1141, %v1172, %v1176
        %v1179 = vshrl.u32 %v1128, 16
        %v1181 = vshll.u32 %v1128, 16
        %v1183 = vrot.slane %v1181, 1
        %v1184 = vor.u32 %v1179, %v1183
        %v1186 = vshll.u32 %v1136, 16
        %v1188 = vrot.slane %v1186, 1
        %v1189 = vsel %vm1141, %v1184, %v1188
        %v1191 = vshrl.u32 %v1129, 16
        %v1193 = vshll.u32 %v1129, 16
        %v1195 = vrot.slane %v1193, 1
        %v1196 = vor.u32 %v1191, %v1195
        %v1198 = vshll.u32 %v1137, 16
        %v1200 = vrot.slane %v1198, 1
        %v1201 = vsel %vm1141, %v1196, %v1200
        %v1203 = vshrl.u32 %v1130, 16
        %v1205 = vshll.u32 %v1130, 16
        %v1207 = vrot.slane %v1205, 1
        %v1208 = vor.u32 %v1203, %v1207
        %v1210 = vshll.u32 %v1138, 16
        %v1212 = vrot.slane %v1210, 1
        %v1213 = vsel %vm1141, %v1208, %v1212
        %v1215 = vshrl.u32 %v1131, 16
        %v1217 = vshll.u32 %v1131, 16
        %v1219 = vrot.slane %v1217, 1
        %v1220 = vor.u32 %v1215, %v1219
        %v1222 = vshll.u32 %v1139, 16
        %v1224 = vrot.slane %v1222, 1
        %v1225 = vsel %vm1141, %v1220, %v1224
        %v1227 = vshrl.u32 %v1132, 16
        %v1229 = vshll.u32 %v1132, 16
        %v1231 = vrot.slane %v1229, 1
        %v1232 = vor.u32 %v1227, %v1231
        %v1234 = vshll.u32 %v1140, 16
        %v1236 = vrot.slane %v1234, 1
        %v1237 = vsel %vm1141, %v1232, %v1236
        %v1238 = vld [vmem:[#allocation2] sm:$0xfe]
        %v1239 = vld [vmem:[#allocation2 + $0x10] sm:$0xfe]
        %v1240 = vld [vmem:[#allocation2 + $0x20] sm:$0xfe]
        %v1241 = vld [vmem:[#allocation2 + $0x30] sm:$0xfe]
        %v1242 = vld [vmem:[#allocation2 + $0x40] sm:$0xfe]
        %v1243 = vld [vmem:[#allocation2 + $0x50] sm:$0xfe]
        %v1244 = vld [vmem:[#allocation2 + $0x60] sm:$0xfe]
        %v1245 = vld [vmem:[#allocation2 + $0x70] sm:$0xfe]
        %vm1262 = vcmask 1046528
        %v1263 = vrot.slane %v1238, 1
        %v1264 = vrot.slane %v1133, 1
        %v1265 = vsel %vm1262, %v1263, %v1264
        %v1266 = vrot.slane %v1239, 1
        %v1267 = vrot.slane %v1134, 1
        %v1268 = vsel %vm1262, %v1266, %v1267
        %v1269 = vrot.slane %v1240, 1
        %v1270 = vrot.slane %v1135, 1
        %v1271 = vsel %vm1262, %v1269, %v1270
        %v1272 = vrot.slane %v1241, 1
        %v1273 = vrot.slane %v1136, 1
        %v1274 = vsel %vm1262, %v1272, %v1273
        %v1275 = vrot.slane %v1242, 1
        %v1276 = vrot.slane %v1137, 1
        %v1277 = vsel %vm1262, %v1275, %v1276
        %v1278 = vrot.slane %v1243, 1
        %v1279 = vrot.slane %v1138, 1
        %v1280 = vsel %vm1262, %v1278, %v1279
        %v1281 = vrot.slane %v1244, 1
        %v1282 = vrot.slane %v1139, 1
        %v1283 = vsel %vm1262, %v1281, %v1282
        %v1284 = vrot.slane %v1245, 1
        %v1285 = vrot.slane %v1140, 1
        %v1286 = vsel %vm1262, %v1284, %v1285
        %v1287 = vld [vmem:[%s866] sm:$0xff]
        %v1288 = vld [vmem:[%s866 + $0x10] sm:$0xff]
        %v1289 = vld [vmem:[%s866 + $0x20] sm:$0xff]
        %v1290 = vld [vmem:[%s866 + $0x30] sm:$0xff]
        %v1291 = vld [vmem:[%s866 + $0x40] sm:$0xff]
        %v1292 = vld [vmem:[%s866 + $0x50] sm:$0xff]
        %v1293 = vld [vmem:[%s866 + $0x60] sm:$0xff]
        %v1294 = vld [vmem:[%s866 + $0x70] sm:$0xff]
        %v1295 = vld [vmem:[%s866 + $0x8] sm:$0x1]
        %v1296 = vld [vmem:[%s866 + $0x18] sm:$0x1]
        %v1297 = vld [vmem:[%s866 + $0x28] sm:$0x1]
        %v1298 = vld [vmem:[%s866 + $0x38] sm:$0x1]
        %v1299 = vld [vmem:[%s866 + $0x48] sm:$0x1]
        %v1300 = vld [vmem:[%s866 + $0x58] sm:$0x1]
        %v1301 = vld [vmem:[%s866 + $0x68] sm:$0x1]
        %v1302 = vld [vmem:[%s866 + $0x78] sm:$0x1]
        %v1304 = vshrl.u32 %v1287, 16
        %v1306 = vshll.u32 %v1287, 16
        %v1308 = vrot.slane %v1306, 1
        %v1309 = vor.u32 %v1304, %v1308
        %v1311 = vshll.u32 %v1295, 16
        %v1313 = vrot.slane %v1311, 1
        %v1314 = vsel %vm1141, %v1309, %v1313
        %v1316 = vshrl.u32 %v1288, 16
        %v1318 = vshll.u32 %v1288, 16
        %v1320 = vrot.slane %v1318, 1
        %v1321 = vor.u32 %v1316, %v1320
        %v1323 = vshll.u32 %v1296, 16
        %v1325 = vrot.slane %v1323, 1
        %v1326 = vsel %vm1141, %v1321, %v1325
        %v1328 = vshrl.u32 %v1289, 16
        %v1330 = vshll.u32 %v1289, 16
        %v1332 = vrot.slane %v1330, 1
        %v1333 = vor.u32 %v1328, %v1332
        %v1335 = vshll.u32 %v1297, 16
        %v1337 = vrot.slane %v1335, 1
        %v1338 = vsel %vm1141, %v1333, %v1337
        %v1340 = vshrl.u32 %v1290, 16
        %v1342 = vshll.u32 %v1290, 16
        %v1344 = vrot.slane %v1342, 1
        %v1345 = vor.u32 %v1340, %v1344
        %v1347 = vshll.u32 %v1298, 16
        %v1349 = vrot.slane %v1347, 1
        %v1350 = vsel %vm1141, %v1345, %v1349
        %v1352 = vshrl.u32 %v1291, 16
        %v1354 = vshll.u32 %v1291, 16
        %v1356 = vrot.slane %v1354, 1
        %v1357 = vor.u32 %v1352, %v1356
        %v1359 = vshll.u32 %v1299, 16
        %v1361 = vrot.slane %v1359, 1
        %v1362 = vsel %vm1141, %v1357, %v1361
        %v1364 = vshrl.u32 %v1292, 16
        %v1366 = vshll.u32 %v1292, 16
        %v1368 = vrot.slane %v1366, 1
        %v1369 = vor.u32 %v1364, %v1368
        %v1371 = vshll.u32 %v1300, 16
        %v1373 = vrot.slane %v1371, 1
        %v1374 = vsel %vm1141, %v1369, %v1373
        %v1376 = vshrl.u32 %v1293, 16
        %v1378 = vshll.u32 %v1293, 16
        %v1380 = vrot.slane %v1378, 1
        %v1381 = vor.u32 %v1376, %v1380
        %v1383 = vshll.u32 %v1301, 16
        %v1385 = vrot.slane %v1383, 1
        %v1386 = vsel %vm1141, %v1381, %v1385
        %v1388 = vshrl.u32 %v1294, 16
        %v1390 = vshll.u32 %v1294, 16
        %v1392 = vrot.slane %v1390, 1
        %v1393 = vor.u32 %v1388, %v1392
        %v1395 = vshll.u32 %v1302, 16
        %v1397 = vrot.slane %v1395, 1
        %v1398 = vsel %vm1141, %v1393, %v1397
        %v1399 = vld [vmem:[%s866] sm:$0xfe]
        %v1400 = vld [vmem:[%s866 + $0x10] sm:$0xfe]
        %v1401 = vld [vmem:[%s866 + $0x20] sm:$0xfe]
        %v1402 = vld [vmem:[%s866 + $0x30] sm:$0xfe]
        %v1403 = vld [vmem:[%s866 + $0x40] sm:$0xfe]
        %v1404 = vld [vmem:[%s866 + $0x50] sm:$0xfe]
        %v1405 = vld [vmem:[%s866 + $0x60] sm:$0xfe]
        %v1406 = vld [vmem:[%s866 + $0x70] sm:$0xfe]
        %v1423 = vrot.slane %v1399, 1
        %v1424 = vrot.slane %v1295, 1
        %v1425 = vsel %vm1262, %v1423, %v1424
        %v1426 = vrot.slane %v1400, 1
        %v1427 = vrot.slane %v1296, 1
        %v1428 = vsel %vm1262, %v1426, %v1427
        %v1429 = vrot.slane %v1401, 1
        %v1430 = vrot.slane %v1297, 1
        %v1431 = vsel %vm1262, %v1429, %v1430
        %v1432 = vrot.slane %v1402, 1
        %v1433 = vrot.slane %v1298, 1
        %v1434 = vsel %vm1262, %v1432, %v1433
        %v1435 = vrot.slane %v1403, 1
        %v1436 = vrot.slane %v1299, 1
        %v1437 = vsel %vm1262, %v1435, %v1436
        %v1438 = vrot.slane %v1404, 1
        %v1439 = vrot.slane %v1300, 1
        %v1440 = vsel %vm1262, %v1438, %v1439
        %v1441 = vrot.slane %v1405, 1
        %v1442 = vrot.slane %v1301, 1
        %v1443 = vsel %vm1262, %v1441, %v1442
        %v1444 = vrot.slane %v1406, 1
        %v1445 = vrot.slane %v1302, 1
        %v1446 = vsel %vm1262, %v1444, %v1445
        %s1447 = scalar_lea.vmem [#allocation2], 32
        %v1448 = vld [vmem:[%s1447] sm:$0xff]
        %v1449 = vld [vmem:[%s1447 + $0x10] sm:$0xff]
        %v1450 = vld [vmem:[%s1447 + $0x20] sm:$0xff]
        %v1451 = vld [vmem:[%s1447 + $0x30] sm:$0xff]
        %v1452 = vld [vmem:[%s1447 + $0x40] sm:$0xff]
        %v1453 = vld [vmem:[%s1447 + $0x50] sm:$0xff]
        %v1454 = vld [vmem:[%s1447 + $0x60] sm:$0xff]
        %v1455 = vld [vmem:[%s1447 + $0x70] sm:$0xff]
        %v1456 = vld [vmem:[%s1447 + $0x8] sm:$0x1]
        %v1457 = vld [vmem:[%s1447 + $0x18] sm:$0x1]
        %v1458 = vld [vmem:[%s1447 + $0x28] sm:$0x1]
        %v1459 = vld [vmem:[%s1447 + $0x38] sm:$0x1]
        %v1460 = vld [vmem:[%s1447 + $0x48] sm:$0x1]
        %v1461 = vld [vmem:[%s1447 + $0x58] sm:$0x1]
        %v1462 = vld [vmem:[%s1447 + $0x68] sm:$0x1]
        %v1463 = vld [vmem:[%s1447 + $0x78] sm:$0x1]
        %v1465 = vshrl.u32 %v1448, 16
        %v1467 = vshll.u32 %v1448, 16
        %v1469 = vrot.slane %v1467, 1
        %v1470 = vor.u32 %v1465, %v1469
        %v1472 = vshll.u32 %v1456, 16
        %v1474 = vrot.slane %v1472, 1
        %v1475 = vsel %vm1141, %v1470, %v1474
        %v1477 = vshrl.u32 %v1449, 16
        %v1479 = vshll.u32 %v1449, 16
        %v1481 = vrot.slane %v1479, 1
        %v1482 = vor.u32 %v1477, %v1481
        %v1484 = vshll.u32 %v1457, 16
        %v1486 = vrot.slane %v1484, 1
        %v1487 = vsel %vm1141, %v1482, %v1486
        %v1489 = vshrl.u32 %v1450, 16
        %v1491 = vshll.u32 %v1450, 16
        %v1493 = vrot.slane %v1491, 1
        %v1494 = vor.u32 %v1489, %v1493
        %v1496 = vshll.u32 %v1458, 16
        %v1498 = vrot.slane %v1496, 1
        %v1499 = vsel %vm1141, %v1494, %v1498
        %v1501 = vshrl.u32 %v1451, 16
        %v1503 = vshll.u32 %v1451, 16
        %v1505 = vrot.slane %v1503, 1
        %v1506 = vor.u32 %v1501, %v1505
        %v1508 = vshll.u32 %v1459, 16
        %v1510 = vrot.slane %v1508, 1
        %v1511 = vsel %vm1141, %v1506, %v1510
        %v1513 = vshrl.u32 %v1452, 16
        %v1515 = vshll.u32 %v1452, 16
        %v1517 = vrot.slane %v1515, 1
        %v1518 = vor.u32 %v1513, %v1517
        %v1520 = vshll.u32 %v1460, 16
        %v1522 = vrot.slane %v1520, 1
        %v1523 = vsel %vm1141, %v1518, %v1522
        %v1525 = vshrl.u32 %v1453, 16
        %v1527 = vshll.u32 %v1453, 16
        %v1529 = vrot.slane %v1527, 1
        %v1530 = vor.u32 %v1525, %v1529
        %v1532 = vshll.u32 %v1461, 16
        %v1534 = vrot.slane %v1532, 1
        %v1535 = vsel %vm1141, %v1530, %v1534
        %v1537 = vshrl.u32 %v1454, 16
        %v1539 = vshll.u32 %v1454, 16
        %v1541 = vrot.slane %v1539, 1
        %v1542 = vor.u32 %v1537, %v1541
        %v1544 = vshll.u32 %v1462, 16
        %v1546 = vrot.slane %v1544, 1
        %v1547 = vsel %vm1141, %v1542, %v1546
        %v1549 = vshrl.u32 %v1455, 16
        %v1551 = vshll.u32 %v1455, 16
        %v1553 = vrot.slane %v1551, 1
        %v1554 = vor.u32 %v1549, %v1553
        %v1556 = vshll.u32 %v1463, 16
        %v1558 = vrot.slane %v1556, 1
        %v1559 = vsel %vm1141, %v1554, %v1558
        %v1560 = vld [vmem:[%s1447] sm:$0xfe]
        %v1561 = vld [vmem:[%s1447 + $0x10] sm:$0xfe]
        %v1562 = vld [vmem:[%s1447 + $0x20] sm:$0xfe]
        %v1563 = vld [vmem:[%s1447 + $0x30] sm:$0xfe]
        %v1564 = vld [vmem:[%s1447 + $0x40] sm:$0xfe]
        %v1565 = vld [vmem:[%s1447 + $0x50] sm:$0xfe]
        %v1566 = vld [vmem:[%s1447 + $0x60] sm:$0xfe]
        %v1567 = vld [vmem:[%s1447 + $0x70] sm:$0xfe]
        %v1584 = vrot.slane %v1560, 1
        %v1585 = vrot.slane %v1456, 1
        %v1586 = vsel %vm1262, %v1584, %v1585
        %v1587 = vrot.slane %v1561, 1
        %v1588 = vrot.slane %v1457, 1
        %v1589 = vsel %vm1262, %v1587, %v1588
        %v1590 = vrot.slane %v1562, 1
        %v1591 = vrot.slane %v1458, 1
        %v1592 = vsel %vm1262, %v1590, %v1591
        %v1593 = vrot.slane %v1563, 1
        %v1594 = vrot.slane %v1459, 1
        %v1595 = vsel %vm1262, %v1593, %v1594
        %v1596 = vrot.slane %v1564, 1
        %v1597 = vrot.slane %v1460, 1
        %v1598 = vsel %vm1262, %v1596, %v1597
        %v1599 = vrot.slane %v1565, 1
        %v1600 = vrot.slane %v1461, 1
        %v1601 = vsel %vm1262, %v1599, %v1600
        %v1602 = vrot.slane %v1566, 1
        %v1603 = vrot.slane %v1462, 1
        %v1604 = vsel %vm1262, %v1602, %v1603
        %v1605 = vrot.slane %v1567, 1
        %v1606 = vrot.slane %v1463, 1
        %v1607 = vsel %vm1262, %v1605, %v1606
        %1608 = vrot.lane.b32.xlu0 %v1153, 64
        %v1609 = vpop.permute.xlu0 %1608
        %1610 = vrot.lane.b32.xlu0 %v1165, 64
        %v1611 = vpop.permute.xlu0 %1610
        %1612 = vrot.lane.b32.xlu0 %v1177, 64
        %v1613 = vpop.permute.xlu0 %1612
        %1614 = vrot.lane.b32.xlu0 %v1189, 64
        %v1615 = vpop.permute.xlu0 %1614
        %1616 = vrot.lane.b32.xlu0 %v1201, 64
        %v1617 = vpop.permute.xlu0 %1616
        %1618 = vrot.lane.b32.xlu0 %v1213, 64
        %v1619 = vpop.permute.xlu0 %1618
        %1620 = vrot.lane.b32.xlu0 %v1225, 64
        %v1621 = vpop.permute.xlu0 %1620
        %1622 = vrot.lane.b32.xlu0 %v1237, 64
        %v1623 = vpop.permute.xlu0 %1622
        %1632 = vrot.lane.b32.xlu0 %v1287, 64
        %v1633 = vpop.permute.xlu0 %1632
        %1634 = vrot.lane.b32.xlu0 %v1288, 64
        %v1635 = vpop.permute.xlu0 %1634
        %1636 = vrot.lane.b32.xlu0 %v1289, 64
        %v1637 = vpop.permute.xlu0 %1636
        %1638 = vrot.lane.b32.xlu0 %v1290, 64
        %v1639 = vpop.permute.xlu0 %1638
        %1640 = vrot.lane.b32.xlu0 %v1291, 64
        %v1641 = vpop.permute.xlu0 %1640
        %1642 = vrot.lane.b32.xlu0 %v1292, 64
        %v1643 = vpop.permute.xlu0 %1642
        %1644 = vrot.lane.b32.xlu0 %v1293, 64
        %v1645 = vpop.permute.xlu0 %1644
        %1646 = vrot.lane.b32.xlu0 %v1294, 64
        %v1647 = vpop.permute.xlu0 %1646
        %1648 = vrot.lane.b32.xlu0 %v1425, 64
        %v1649 = vpop.permute.xlu0 %1648
        %1650 = vrot.lane.b32.xlu0 %v1428, 64
        %v1651 = vpop.permute.xlu0 %1650
        %1652 = vrot.lane.b32.xlu0 %v1431, 64
        %v1653 = vpop.permute.xlu0 %1652
        %1654 = vrot.lane.b32.xlu0 %v1434, 64
        %v1655 = vpop.permute.xlu0 %1654
        %1656 = vrot.lane.b32.xlu0 %v1437, 64
        %v1657 = vpop.permute.xlu0 %1656
        %1658 = vrot.lane.b32.xlu0 %v1440, 64
        %v1659 = vpop.permute.xlu0 %1658
        %1660 = vrot.lane.b32.xlu0 %v1443, 64
        %v1661 = vpop.permute.xlu0 %1660
        %1662 = vrot.lane.b32.xlu0 %v1446, 64
        %v1663 = vpop.permute.xlu0 %1662
        %1664 = vrot.lane.b32.xlu0 %v1475, 64
        %v1665 = vpop.permute.xlu0 %1664
        %1666 = vrot.lane.b32.xlu0 %v1487, 64
        %v1667 = vpop.permute.xlu0 %1666
        %1668 = vrot.lane.b32.xlu0 %v1499, 64
        %v1669 = vpop.permute.xlu0 %1668
        %1670 = vrot.lane.b32.xlu0 %v1511, 64
        %v1671 = vpop.permute.xlu0 %1670
        %1672 = vrot.lane.b32.xlu0 %v1523, 64
        %v1673 = vpop.permute.xlu0 %1672
        %1674 = vrot.lane.b32.xlu0 %v1535, 64
        %v1675 = vpop.permute.xlu0 %1674
        %1676 = vrot.lane.b32.xlu0 %v1547, 64
        %v1677 = vpop.permute.xlu0 %1676
        %1678 = vrot.lane.b32.xlu0 %v1559, 64
        %v1679 = vpop.permute.xlu0 %1678
        %vm1680 = vcmask 523264
        %v1682 = vsel %vm1680, %v1125, %v1609
        %v1685 = vsel %vm1680, %v1126, %v1611
        %v1688 = vsel %vm1680, %v1127, %v1613
        %v1691 = vsel %vm1680, %v1128, %v1615
        %v1694 = vsel %vm1680, %v1129, %v1617
        %v1697 = vsel %vm1680, %v1130, %v1619
        %v1700 = vsel %vm1680, %v1131, %v1621
        %v1703 = vsel %vm1680, %v1132, %v1623
        %v1707 = vsel %vm1680, %v1265, %v1633
        %v1711 = vsel %vm1680, %v1268, %v1635
        %v1715 = vsel %vm1680, %v1271, %v1637
        %v1719 = vsel %vm1680, %v1274, %v1639
        %v1723 = vsel %vm1680, %v1277, %v1641
        %v1727 = vsel %vm1680, %v1280, %v1643
        %v1731 = vsel %vm1680, %v1283, %v1645
        %v1735 = vsel %vm1680, %v1286, %v1647
        %v1739 = vsel %vm1680, %v1314, %v1649
        %v1743 = vsel %vm1680, %v1326, %v1651
        %v1747 = vsel %vm1680, %v1338, %v1653
        %v1751 = vsel %vm1680, %v1350, %v1655
        %v1755 = vsel %vm1680, %v1362, %v1657
        %v1759 = vsel %vm1680, %v1374, %v1659
        %v1763 = vsel %vm1680, %v1386, %v1661
        %v1767 = vsel %vm1680, %v1398, %v1663
        %v1770 = vsel %vm1680, %v1448, %v1665
        %v1773 = vsel %vm1680, %v1449, %v1667
        %v1776 = vsel %vm1680, %v1450, %v1669
        %v1779 = vsel %vm1680, %v1451, %v1671
        %v1782 = vsel %vm1680, %v1452, %v1673
        %v1785 = vsel %vm1680, %v1453, %v1675
        %v1788 = vsel %vm1680, %v1454, %v1677
        %v1791 = vsel %vm1680, %v1455, %v1679
        %v1793 = vld [vmem:[%s5] sm:$0xf]
        %v1794 = vld [vmem:[%s5 + $0x4] sm:$0xf]
        %v1795 = vld [vmem:[%s5 + $0x8] sm:$0xf]
        %v1796 = vld [vmem:[%s5 + $0xc] sm:$0xf]
        %v1797 = vld [vmem:[%s5 + $0x10] sm:$0xf]
        %v1798 = vld [vmem:[%s5 + $0x14] sm:$0xf]
        %v1799 = vld [vmem:[%s5 + $0x18] sm:$0xf]
        %v1800 = vld [vmem:[%s5 + $0x1c] sm:$0xf]
        %v1801 = vld [vmem:[%s5 + $0x20] sm:$0xf]
        %v1802 = vld [vmem:[%s5 + $0x24] sm:$0xf]
        %v1803 = vld [vmem:[%s5 + $0x28] sm:$0xf]
        %v1804 = vld [vmem:[%s5 + $0x2c] sm:$0xf]
        %v1805 = vld [vmem:[%s5 + $0x30] sm:$0xf]
        %v1806 = vld [vmem:[%s5 + $0x34] sm:$0xf]
        %v1807 = vld [vmem:[%s5 + $0x38] sm:$0xf]
        %v1808 = vld [vmem:[%s5 + $0x3c] sm:$0xf]
        %v1809 = vld [vmem:[%s5 + $0x40] sm:$0xf]
        %v1810 = vld [vmem:[%s5 + $0x44] sm:$0xf]
        %v1811 = vld [vmem:[%s5 + $0x48] sm:$0xf]
        %v1812 = vld [vmem:[%s5 + $0x4c] sm:$0xf]
        %v1813 = vld [vmem:[%s5 + $0x50] sm:$0xf]
        %v1814 = vld [vmem:[%s5 + $0x54] sm:$0xf]
        %v1815 = vld [vmem:[%s5 + $0x58] sm:$0xf]
        %v1816 = vld [vmem:[%s5 + $0x5c] sm:$0xf]
        %v1817 = vld [vmem:[%s5 + $0x60] sm:$0xf]
        %v1818 = vld [vmem:[%s5 + $0x64] sm:$0xf]
        %v1819 = vld [vmem:[%s5 + $0x68] sm:$0xf]
        %v1820 = vld [vmem:[%s5 + $0x6c] sm:$0xf]
        %v1821 = vld [vmem:[%s5 + $0x70] sm:$0xf]
        %v1822 = vld [vmem:[%s5 + $0x74] sm:$0xf]
        %v1823 = vld [vmem:[%s5 + $0x78] sm:$0xf]
        %v1824 = vld [vmem:[%s5 + $0x7c] sm:$0xf]
        %v1825 = vld [vmem:[%s5 + $0x80] sm:$0xf]
        %v1826 = vld [vmem:[%s5 + $0x84] sm:$0xf]
        %v1827 = vld [vmem:[%s5 + $0x88] sm:$0xf]
        %v1828 = vld [vmem:[%s5 + $0x8c] sm:$0xf]
        %v1829 = vld [vmem:[%s5 + $0x90] sm:$0xf]
        %v1830 = vld [vmem:[%s5 + $0x94] sm:$0xf]
        %v1831 = vld [vmem:[%s5 + $0x98] sm:$0xf]
        %v1832 = vld [vmem:[%s5 + $0x9c] sm:$0xf]
        %v1833 = vld [vmem:[%s5 + $0xa0] sm:$0xf]
        %v1834 = vld [vmem:[%s5 + $0xa4] sm:$0xf]
        %v1835 = vld [vmem:[%s5 + $0xa8] sm:$0xf]
        %v1836 = vld [vmem:[%s5 + $0xac] sm:$0xf]
        %v1837 = vld [vmem:[%s5 + $0xb0] sm:$0xf]
        %v1838 = vld [vmem:[%s5 + $0xb4] sm:$0xf]
        %v1839 = vld [vmem:[%s5 + $0xb8] sm:$0xf]
        %v1840 = vld [vmem:[%s5 + $0xbc] sm:$0xf]
        %v1841 = vld [vmem:[%s5 + $0xc0] sm:$0xf]
        %v1842 = vld [vmem:[%s5 + $0xc4] sm:$0xf]
        %v1843 = vld [vmem:[%s5 + $0xc8] sm:$0xf]
        %v1844 = vld [vmem:[%s5 + $0xcc] sm:$0xf]
        %v1845 = vld [vmem:[%s5 + $0xd0] sm:$0xf]
        %v1846 = vld [vmem:[%s5 + $0xd4] sm:$0xf]
        %v1847 = vld [vmem:[%s5 + $0xd8] sm:$0xf]
        %v1848 = vld [vmem:[%s5 + $0xdc] sm:$0xf]
        %v1849 = vld [vmem:[%s5 + $0xe0] sm:$0xf]
        %v1850 = vld [vmem:[%s5 + $0xe4] sm:$0xf]
        %v1851 = vld [vmem:[%s5 + $0xe8] sm:$0xf]
        %v1852 = vld [vmem:[%s5 + $0xec] sm:$0xf]
        %v1853 = vld [vmem:[%s5 + $0xf0] sm:$0xf]
        %v1854 = vld [vmem:[%s5 + $0xf4] sm:$0xf]
        %v1855 = vld [vmem:[%s5 + $0xf8] sm:$0xf]
        %v1856 = vld [vmem:[%s5 + $0xfc] sm:$0xf]
        %v1857 = vld [vmem:[%s5 + $0x100] sm:$0xf]
        %v1858 = vld [vmem:[%s5 + $0x104] sm:$0xf]
        %v1859 = vld [vmem:[%s5 + $0x108] sm:$0xf]
        %v1860 = vld [vmem:[%s5 + $0x10c] sm:$0xf]
        %v1861 = vld [vmem:[%s5 + $0x110] sm:$0xf]
        %v1862 = vld [vmem:[%s5 + $0x114] sm:$0xf]
        %v1863 = vld [vmem:[%s5 + $0x118] sm:$0xf]
        %v1864 = vld [vmem:[%s5 + $0x11c] sm:$0xf]
        %v1865 = vld [vmem:[%s6] sm:$0x1]
        %v1867 = vlaneseq
        %v1868 = vshrl.u32 %v1867, 7
        %v1869 = vsub.s32 0, %v1868
        %v1870 = vrot.slane %v1865, %v1869
        %v1944 = vunpack.c.l.b16 %v1793
        %v1945 = vunpack.c.l.b16 %v1794
        %v1946 = vunpack.c.l.b16 %v1795
        %v1947 = vunpack.c.l.b16 %v1796
        %v1948 = vunpack.c.l.b16 %v1797
        %v1949 = vunpack.c.l.b16 %v1798
        %v1950 = vunpack.c.l.b16 %v1799
        %v1951 = vunpack.c.l.b16 %v1800
        %v1952 = vunpack.c.l.b16 %v1801
        %v1953 = vunpack.c.l.b16 %v1802
        %v1954 = vunpack.c.l.b16 %v1803
        %v1955 = vunpack.c.l.b16 %v1804
        %v1956 = vunpack.c.l.b16 %v1805
        %v1957 = vunpack.c.l.b16 %v1806
        %v1958 = vunpack.c.l.b16 %v1807
        %v1959 = vunpack.c.l.b16 %v1808
        %v1960 = vunpack.c.l.b16 %v1809
        %v1961 = vunpack.c.l.b16 %v1810
        %v1962 = vunpack.c.l.b16 %v1811
        %v1963 = vunpack.c.l.b16 %v1812
        %v1964 = vunpack.c.l.b16 %v1813
        %v1965 = vunpack.c.l.b16 %v1814
        %v1966 = vunpack.c.l.b16 %v1815
        %v1967 = vunpack.c.l.b16 %v1816
        %v1968 = vunpack.c.l.b16 %v1817
        %v1969 = vunpack.c.l.b16 %v1818
        %v1970 = vunpack.c.l.b16 %v1819
        %v1971 = vunpack.c.l.b16 %v1820
        %v1972 = vunpack.c.l.b16 %v1821
        %v1973 = vunpack.c.l.b16 %v1822
        %v1974 = vunpack.c.l.b16 %v1823
        %v1975 = vunpack.c.l.b16 %v1824
        %v1976 = vunpack.c.l.b16 %v1825
        %v1977 = vunpack.c.l.b16 %v1826
        %v1978 = vunpack.c.l.b16 %v1827
        %v1979 = vunpack.c.l.b16 %v1828
        %v1980 = vunpack.c.l.b16 %v1829
        %v1981 = vunpack.c.l.b16 %v1830
        %v1982 = vunpack.c.l.b16 %v1831
        %v1983 = vunpack.c.l.b16 %v1832
        %v1984 = vunpack.c.l.b16 %v1833
        %v1985 = vunpack.c.l.b16 %v1834
        %v1986 = vunpack.c.l.b16 %v1835
        %v1987 = vunpack.c.l.b16 %v1836
        %v1988 = vunpack.c.l.b16 %v1837
        %v1989 = vunpack.c.l.b16 %v1838
        %v1990 = vunpack.c.l.b16 %v1839
        %v1991 = vunpack.c.l.b16 %v1840
        %v1992 = vunpack.c.l.b16 %v1841
        %v1993 = vunpack.c.l.b16 %v1842
        %v1994 = vunpack.c.l.b16 %v1843
        %v1995 = vunpack.c.l.b16 %v1844
        %v1996 = vunpack.c.l.b16 %v1845
        %v1997 = vunpack.c.l.b16 %v1846
        %v1998 = vunpack.c.l.b16 %v1847
        %v1999 = vunpack.c.l.b16 %v1848
        %v2000 = vunpack.c.l.b16 %v1849
        %v2001 = vunpack.c.l.b16 %v1850
        %v2002 = vunpack.c.l.b16 %v1851
        %v2003 = vunpack.c.l.b16 %v1852
        %v2004 = vunpack.c.l.b16 %v1853
        %v2005 = vunpack.c.l.b16 %v1854
        %v2006 = vunpack.c.l.b16 %v1855
        %v2007 = vunpack.c.l.b16 %v1856
        %v2008 = vunpack.c.l.b16 %v1857
        %v2009 = vunpack.c.l.b16 %v1858
        %v2010 = vunpack.c.l.b16 %v1859
        %v2011 = vunpack.c.l.b16 %v1860
        %v2012 = vunpack.c.l.b16 %v1861
        %v2013 = vunpack.c.l.b16 %v1862
        %v2014 = vunpack.c.l.b16 %v1863
        %v2015 = vunpack.c.l.b16 %v1864
        %v2016 = vpack.c.b16 %v1945, %v1944
        %v2017 = vpack.c.b16 %v1947, %v1946
        %v2018 = vpack.c.b16 %v1949, %v1948
        %v2019 = vpack.c.b16 %v1951, %v1950
        %v2020 = vpack.c.b16 %v1953, %v1952
        %v2021 = vpack.c.b16 %v1955, %v1954
        %v2022 = vpack.c.b16 %v1957, %v1956
        %v2023 = vpack.c.b16 %v1959, %v1958
        %v2024 = vpack.c.b16 %v1961, %v1960
        %v2025 = vpack.c.b16 %v1963, %v1962
        %v2026 = vpack.c.b16 %v1965, %v1964
        %v2027 = vpack.c.b16 %v1967, %v1966
        %v2028 = vpack.c.b16 %v1969, %v1968
        %v2029 = vpack.c.b16 %v1971, %v1970
        %v2030 = vpack.c.b16 %v1973, %v1972
        %v2031 = vpack.c.b16 %v1975, %v1974
        %v2032 = vpack.c.b16 %v1977, %v1976
        %v2033 = vpack.c.b16 %v1979, %v1978
        %v2034 = vpack.c.b16 %v1981, %v1980
        %v2035 = vpack.c.b16 %v1983, %v1982
        %v2036 = vpack.c.b16 %v1985, %v1984
        %v2037 = vpack.c.b16 %v1987, %v1986
        %v2038 = vpack.c.b16 %v1989, %v1988
        %v2039 = vpack.c.b16 %v1991, %v1990
        %v2040 = vpack.c.b16 %v1993, %v1992
        %v2041 = vpack.c.b16 %v1995, %v1994
        %v2042 = vpack.c.b16 %v1997, %v1996
        %v2043 = vpack.c.b16 %v1999, %v1998
        %v2044 = vpack.c.b16 %v2001, %v2000
        %v2045 = vpack.c.b16 %v2003, %v2002
        %v2046 = vpack.c.b16 %v2005, %v2004
        %v2047 = vpack.c.b16 %v2007, %v2006
        %v2048 = vpack.c.b16 %v2009, %v2008
        %v2049 = vpack.c.b16 %v2011, %v2010
        %v2050 = vpack.c.b16 %v2013, %v2012
        %v2051 = vpack.c.b16 %v2015, %v2014
        %v2089 = vsel %vm1680, %v1586, 0
        %v2092 = vsel %vm1680, %v1589, 0
        %v2095 = vsel %vm1680, %v1592, 0
        %v2098 = vsel %vm1680, %v1595, 0
        %v2101 = vsel %vm1680, %v1598, 0
        %v2104 = vsel %vm1680, %v1601, 0
        %v2107 = vsel %vm1680, %v1604, 0
        %v2110 = vsel %vm1680, %v1607, 0
        %2112 = vmatprep.subr.bf16.mxu0 0
        %2113 = vmatpush1.bf16.msra.mxu0 %v2016
        %2114 = vmatprep.subr.bf16.mxu0 0
        %2115 = vmatpush1.bf16.msra.mxu0 %v2017
        %2116 = vmatprep.subr.bf16.mxu0 0
        %2117 = vmatpush1.bf16.msra.mxu0 %v2018
        %2118 = vmatprep.subr.bf16.mxu0 0
        %2119 = vmatpush1.bf16.msra.mxu0 %v2019
        %2120 = vmatprep.subr.bf16.mxu0 0
        %2121 = vmatpush1.bf16.msra.mxu0 %v2020
        %2122 = vmatprep.subr.bf16.mxu0 0
        %2123 = vmatpush1.bf16.msra.mxu0 %v2021
        %2124 = vmatprep.subr.bf16.mxu0 0
        %2125 = vmatpush1.bf16.msra.mxu0 %v2022
        %2126 = vmatprep.subr.bf16.mxu0 0
        %2127 = vmatpush1.bf16.msra.mxu0 %v2023
        %2128 = vmatprep.subr.bf16.mxu0 0
        %2129 = vmatpush1.bf16.msra.mxu0 %v2024
        %2130 = vmatprep.subr.bf16.mxu0 0
        %2131 = vmatpush1.bf16.msra.mxu0 %v2025
        %2132 = vmatprep.subr.bf16.mxu0 0
        %2133 = vmatpush1.bf16.msra.mxu0 %v2026
        %2134 = vmatprep.subr.bf16.mxu0 0
        %2135 = vmatpush1.bf16.msra.mxu0 %v2027
        %2136 = vmatprep.subr.bf16.mxu0 0
        %2137 = vmatpush1.bf16.msra.mxu0 %v2028
        %2138 = vmatprep.subr.bf16.mxu0 0
        %2139 = vmatpush1.bf16.msra.mxu0 %v2029
        %2140 = vmatprep.subr.bf16.mxu0 0
        %2141 = vmatpush1.bf16.msra.mxu0 %v2030
        %2142 = vmatprep.subr.bf16.mxu0 0
        %2143 = vmatpush1.bf16.msra.mxu0 %v2031
        %2144 = vmatprep.mubr.bf16.mxu0 %v1707
        %2145 = vmatmul.mubr.bf16.gmra.mrb[0].mxu0 %v1682
        %v2146 = vpop.f32.mrb[0].mxu0
        %v2147 = vadd.f32 %v1870, %v2146
        %v2148 = vpop.f32.mrb[0].mxu0
        %v2149 = vpop.f32.mrb[0].mxu0
        %v2150 = vadd.f32 %v1870, %v2149
        %v2151 = vpop.f32.mrb[0].mxu0
        %2152 = vmatprep.mubr.bf16.mxu0 %v1711
        %2153 = vmatmul.mubr.bf16.gmra.mrb[0].mxu0 %v1685
        %v2154 = vpop.f32.mrb[0].mxu0
        %v2155 = vadd.f32 %v1870, %v2154
        %v2156 = vpop.f32.mrb[0].mxu0
        %v2157 = vpop.f32.mrb[0].mxu0
        %v2158 = vadd.f32 %v1870, %v2157
        %v2159 = vpop.f32.mrb[0].mxu0
        %2160 = vmatprep.mubr.bf16.mxu0 %v1715
        %2161 = vmatmul.mubr.bf16.gmra.mrb[0].mxu0 %v1688
        %v2162 = vpop.f32.mrb[0].mxu0
        %v2163 = vadd.f32 %v1870, %v2162
        %v2164 = vpop.f32.mrb[0].mxu0
        %v2165 = vpop.f32.mrb[0].mxu0
        %v2166 = vadd.f32 %v1870, %v2165
        %v2167 = vpop.f32.mrb[0].mxu0
        %2168 = vmatprep.mubr.bf16.mxu0 %v1719
        %2169 = vmatmul.mubr.bf16.gmra.mrb[0].mxu0 %v1691
        %v2170 = vpop.f32.mrb[0].mxu0
        %v2171 = vadd.f32 %v1870, %v2170
        %v2172 = vpop.f32.mrb[0].mxu0
        %v2173 = vpop.f32.mrb[0].mxu0
        %v2174 = vadd.f32 %v1870, %v2173
        %v2175 = vpop.f32.mrb[0].mxu0
        %2176 = vmatprep.mubr.bf16.mxu0 %v1723
        %2177 = vmatmul.mubr.bf16.gmra.mrb[0].mxu0 %v1694
        %v2178 = vpop.f32.mrb[0].mxu0
        %v2179 = vadd.f32 %v1870, %v2178
        %v2180 = vpop.f32.mrb[0].mxu0
        %v2181 = vpop.f32.mrb[0].mxu0
        %v2182 = vadd.f32 %v1870, %v2181
        %v2183 = vpop.f32.mrb[0].mxu0
        %2184 = vmatprep.mubr.bf16.mxu0 %v1727
        %2185 = vmatmul.mubr.bf16.gmra.mrb[0].mxu0 %v1697
        %v2186 = vpop.f32.mrb[0].mxu0
        %v2187 = vadd.f32 %v1870, %v2186
        %v2188 = vpop.f32.mrb[0].mxu0
        %v2189 = vpop.f32.mrb[0].mxu0
        %v2190 = vadd.f32 %v1870, %v2189
        %v2191 = vpop.f32.mrb[0].mxu0
        %2192 = vmatprep.mubr.bf16.mxu0 %v1731
        %2193 = vmatmul.mubr.bf16.gmra.mrb[0].mxu0 %v1700
        %v2194 = vpop.f32.mrb[0].mxu0
        %v2195 = vadd.f32 %v1870, %v2194
        %v2196 = vpop.f32.mrb[0].mxu0
        %v2197 = vpop.f32.mrb[0].mxu0
        %v2198 = vadd.f32 %v1870, %v2197
        %v2199 = vpop.f32.mrb[0].mxu0
        %2200 = vmatprep.mubr.bf16.mxu0 %v1735
        %2201 = vmatmul.mubr.bf16.gmra.mrb[0].mxu0 %v1703
        %v2202 = vpop.f32.mrb[0].mxu0
        %v2203 = vadd.f32 %v1870, %v2202
        %v2204 = vpop.f32.mrb[0].mxu0
        %v2205 = vpop.f32.mrb[0].mxu0
        %v2206 = vadd.f32 %v1870, %v2205
        %v2207 = vpop.f32.mrb[0].mxu0
        %2208 = vdwg.mxu0
        %2209 = vmatprep.subr.bf16.mxu0 0
        %2210 = vmatpush1.bf16.msra.mxu0 %v2032
        %2211 = vmatprep.subr.bf16.mxu0 0
        %2212 = vmatpush1.bf16.msra.mxu0 %v2033
        %2213 = vmatprep.subr.bf16.mxu0 0
        %2214 = vmatpush1.bf16.msra.mxu0 %v2034
        %2215 = vmatprep.subr.bf16.mxu0 0
        %2216 = vmatpush1.bf16.msra.mxu0 %v2035
        %2217 = vmatprep.subr.bf16.mxu0 0
        %2218 = vmatpush1.bf16.msra.mxu0 %v2036
        %2219 = vmatprep.subr.bf16.mxu0 0
        %2220 = vmatpush1.bf16.msra.mxu0 %v2037
        %2221 = vmatprep.subr.bf16.mxu0 0
        %2222 = vmatpush1.bf16.msra.mxu0 %v2038
        %2223 = vmatprep.subr.bf16.mxu0 0
        %2224 = vmatpush1.bf16.msra.mxu0 %v2039
        %2225 = vmatprep.subr.bf16.mxu0 0
        %2226 = vmatpush1.bf16.msra.mxu0 %v2040
        %2227 = vmatprep.subr.bf16.mxu0 0
        %2228 = vmatpush1.bf16.msra.mxu0 %v2041
        %2229 = vmatprep.subr.bf16.mxu0 0
        %2230 = vmatpush1.bf16.msra.mxu0 %v2042
        %2231 = vmatprep.subr.bf16.mxu0 0
        %2232 = vmatpush1.bf16.msra.mxu0 %v2043
        %2233 = vmatprep.subr.bf16.mxu0 0
        %2234 = vmatpush1.bf16.msra.mxu0 %v2044
        %2235 = vmatprep.subr.bf16.mxu0 0
        %2236 = vmatpush1.bf16.msra.mxu0 %v2045
        %2237 = vmatprep.subr.bf16.mxu0 0
        %2238 = vmatpush1.bf16.msra.mxu0 %v2046
        %2239 = vmatprep.subr.bf16.mxu0 0
        %2240 = vmatpush1.bf16.msra.mxu0 %v2047
        %2241 = vmatprep.mubr.bf16.mxu0 %v1770
        %2242 = vmatmul.mubr.bf16.gmra.mrb[0].mxu0 %v1739
        %v2243 = vpop.f32.mrb[0].mxu0
        %v2244 = vadd.f32 %v2147, %v2243
        %v2245 = vpop.f32.mrb[0].mxu0
        %v2246 = vpop.f32.mrb[0].mxu0
        %v2247 = vadd.f32 %v2150, %v2246
        %v2248 = vpop.f32.mrb[0].mxu0
        %2249 = vmatprep.mubr.bf16.mxu0 %v1773
        %2250 = vmatmul.mubr.bf16.gmra.mrb[0].mxu0 %v1743
        %v2251 = vpop.f32.mrb[0].mxu0
        %v2252 = vadd.f32 %v2155, %v2251
        %v2253 = vpop.f32.mrb[0].mxu0
        %v2254 = vpop.f32.mrb[0].mxu0
        %v2255 = vadd.f32 %v2158, %v2254
        %v2256 = vpop.f32.mrb[0].mxu0
        %2257 = vmatprep.mubr.bf16.mxu0 %v1776
        %2258 = vmatmul.mubr.bf16.gmra.mrb[0].mxu0 %v1747
        %v2259 = vpop.f32.mrb[0].mxu0
        %v2260 = vadd.f32 %v2163, %v2259
        %v2261 = vpop.f32.mrb[0].mxu0
        %v2262 = vpop.f32.mrb[0].mxu0
        %v2263 = vadd.f32 %v2166, %v2262
        %v2264 = vpop.f32.mrb[0].mxu0
        %2265 = vmatprep.mubr.bf16.mxu0 %v1779
        %2266 = vmatmul.mubr.bf16.gmra.mrb[0].mxu0 %v1751
        %v2267 = vpop.f32.mrb[0].mxu0
        %v2268 = vadd.f32 %v2171, %v2267
        %v2269 = vpop.f32.mrb[0].mxu0
        %v2270 = vpop.f32.mrb[0].mxu0
        %v2271 = vadd.f32 %v2174, %v2270
        %v2272 = vpop.f32.mrb[0].mxu0
        %2273 = vmatprep.mubr.bf16.mxu0 %v1782
        %2274 = vmatmul.mubr.bf16.gmra.mrb[0].mxu0 %v1755
        %v2275 = vpop.f32.mrb[0].mxu0
        %v2276 = vadd.f32 %v2179, %v2275
        %v2277 = vpop.f32.mrb[0].mxu0
        %v2278 = vpop.f32.mrb[0].mxu0
        %v2279 = vadd.f32 %v2182, %v2278
        %v2280 = vpop.f32.mrb[0].mxu0
        %2281 = vmatprep.mubr.bf16.mxu0 %v1785
        %2282 = vmatmul.mubr.bf16.gmra.mrb[0].mxu0 %v1759
        %v2283 = vpop.f32.mrb[0].mxu0
        %v2284 = vadd.f32 %v2187, %v2283
        %v2285 = vpop.f32.mrb[0].mxu0
        %v2286 = vpop.f32.mrb[0].mxu0
        %v2287 = vadd.f32 %v2190, %v2286
        %v2288 = vpop.f32.mrb[0].mxu0
        %2289 = vmatprep.mubr.bf16.mxu0 %v1788
        %2290 = vmatmul.mubr.bf16.gmra.mrb[0].mxu0 %v1763
        %v2291 = vpop.f32.mrb[0].mxu0
        %v2292 = vadd.f32 %v2195, %v2291
        %v2293 = vpop.f32.mrb[0].mxu0
        %v2294 = vpop.f32.mrb[0].mxu0
        %v2295 = vadd.f32 %v2198, %v2294
        %v2296 = vpop.f32.mrb[0].mxu0
        %2297 = vmatprep.mubr.bf16.mxu0 %v1791
        %2298 = vmatmul.mubr.bf16.gmra.mrb[0].mxu0 %v1767
        %v2299 = vpop.f32.mrb[0].mxu0
        %v2300 = vadd.f32 %v2203, %v2299
        %v2301 = vpop.f32.mrb[0].mxu0
        %v2302 = vpop.f32.mrb[0].mxu0
        %v2303 = vadd.f32 %v2206, %v2302
        %v2304 = vpop.f32.mrb[0].mxu0
        %2305 = vdwg.mxu0
        %2306 = vmatprep.subr.bf16.mxu0 0
        %2307 = vmatpush1.bf16.msra.mxu0 %v2048
        %2308 = vmatprep.subr.bf16.mxu0 0
        %2309 = vmatpush1.bf16.msra.mxu0 %v2049
        %2310 = vmatprep.subr.bf16.mxu0 0
        %2311 = vmatpush1.bf16.msra.mxu0 %v2050
        %2312 = vmatprep.subr.bf16.mxu0 0
        %2313 = vmatpush1.bf16.msra.mxu0 %v2051
        %2314 = vmatprep.subr.bf16.mxu0 0
        %2315 = vmatpush1.bf16.msra.mxu0 0
        %2316 = vmatprep.subr.bf16.mxu0 0
        %2317 = vmatpush1.bf16.msra.mxu0 0
        %2318 = vmatprep.subr.bf16.mxu0 0
        %2319 = vmatpush1.bf16.msra.mxu0 0
        %2320 = vmatprep.subr.bf16.mxu0 0
        %2321 = vmatpush1.bf16.msra.mxu0 0
        %2322 = vmatprep.subr.bf16.mxu0 0
        %2323 = vmatpush1.bf16.msra.mxu0 0
        %2324 = vmatprep.subr.bf16.mxu0 0
        %2325 = vmatpush1.bf16.msra.mxu0 0
        %2326 = vmatprep.subr.bf16.mxu0 0
        %2327 = vmatpush1.bf16.msra.mxu0 0
        %2328 = vmatprep.subr.bf16.mxu0 0
        %2329 = vmatpush1.bf16.msra.mxu0 0
        %2330 = vmatprep.subr.bf16.mxu0 0
        %2331 = vmatpush1.bf16.msra.mxu0 0
        %2332 = vmatprep.subr.bf16.mxu0 0
        %2333 = vmatpush1.bf16.msra.mxu0 0
        %2334 = vmatprep.subr.bf16.mxu0 0
        %2335 = vmatpush1.bf16.msra.mxu0 0
        %2336 = vmatprep.subr.bf16.mxu0 0
        %2337 = vmatpush1.bf16.msra.mxu0 0
        %2338 = vmatprep.mubr.bf16.mxu0 0
        %2339 = vmatmul.mubr.bf16.gmra.mrb[0].mxu0 %v2089
        %v2340 = vpop.f32.mrb[0].mxu0
        %v2341 = vadd.f32 %v2244, %v2340
        %v2342 = vpop.f32.mrb[0].mxu0
        %v2343 = vpop.f32.mrb[0].mxu0
        %v2344 = vadd.f32 %v2247, %v2343
        %v2345 = vpop.f32.mrb[0].mxu0
        %2346 = vmatprep.mubr.bf16.mxu0 0
        %2347 = vmatmul.mubr.bf16.gmra.mrb[0].mxu0 %v2092
        %v2348 = vpop.f32.mrb[0].mxu0
        %v2349 = vadd.f32 %v2252, %v2348
        %v2350 = vpop.f32.mrb[0].mxu0
        %v2351 = vpop.f32.mrb[0].mxu0
        %v2352 = vadd.f32 %v2255, %v2351
        %v2353 = vpop.f32.mrb[0].mxu0
        %2354 = vmatprep.mubr.bf16.mxu0 0
        %2355 = vmatmul.mubr.bf16.gmra.mrb[0].mxu0 %v2095
        %v2356 = vpop.f32.mrb[0].mxu0
        %v2357 = vadd.f32 %v2260, %v2356
        %v2358 = vpop.f32.mrb[0].mxu0
        %v2359 = vpop.f32.mrb[0].mxu0
        %v2360 = vadd.f32 %v2263, %v2359
        %v2361 = vpop.f32.mrb[0].mxu0
        %2362 = vmatprep.mubr.bf16.mxu0 0
        %2363 = vmatmul.mubr.bf16.gmra.mrb[0].mxu0 %v2098
        %v2364 = vpop.f32.mrb[0].mxu0
        %v2365 = vadd.f32 %v2268, %v2364
        %v2366 = vpop.f32.mrb[0].mxu0
        %v2367 = vpop.f32.mrb[0].mxu0
        %v2368 = vadd.f32 %v2271, %v2367
        %v2369 = vpop.f32.mrb[0].mxu0
        %2370 = vmatprep.mubr.bf16.mxu0 0
        %2371 = vmatmul.mubr.bf16.gmra.mrb[0].mxu0 %v2101
        %v2372 = vpop.f32.mrb[0].mxu0
        %v2373 = vadd.f32 %v2276, %v2372
        %v2374 = vpop.f32.mrb[0].mxu0
        %v2375 = vpop.f32.mrb[0].mxu0
        %v2376 = vadd.f32 %v2279, %v2375
        %v2377 = vpop.f32.mrb[0].mxu0
        %2378 = vmatprep.mubr.bf16.mxu0 0
        %2379 = vmatmul.mubr.bf16.gmra.mrb[0].mxu0 %v2104
        %v2380 = vpop.f32.mrb[0].mxu0
        %v2381 = vadd.f32 %v2284, %v2380
        %v2382 = vpop.f32.mrb[0].mxu0
        %v2383 = vpop.f32.mrb[0].mxu0
        %v2384 = vadd.f32 %v2287, %v2383
        %v2385 = vpop.f32.mrb[0].mxu0
        %2386 = vmatprep.mubr.bf16.mxu0 0
        %2387 = vmatmul.mubr.bf16.gmra.mrb[0].mxu0 %v2107
        %v2388 = vpop.f32.mrb[0].mxu0
        %v2389 = vadd.f32 %v2292, %v2388
        %v2390 = vpop.f32.mrb[0].mxu0
        %v2391 = vpop.f32.mrb[0].mxu0
        %v2392 = vadd.f32 %v2295, %v2391
        %v2393 = vpop.f32.mrb[0].mxu0
        %2394 = vmatprep.mubr.bf16.mxu0 0
        %2395 = vmatmul.mubr.bf16.gmra.mrb[0].mxu0 %v2110
        %v2396 = vpop.f32.mrb[0].mxu0
        %v2397 = vadd.f32 %v2300, %v2396
        %v2398 = vpop.f32.mrb[0].mxu0
        %v2399 = vpop.f32.mrb[0].mxu0
        %v2400 = vadd.f32 %v2303, %v2399
        %v2401 = vpop.f32.mrb[0].mxu0
        %2402 = vdwg.mxu0
        %v2403 = vmax.f32 %v2341, 0.0
        %v2404 = vmax.f32 %v2344, 0.0
        %v2405 = vmax.f32 %v2349, 0.0
        %v2406 = vmax.f32 %v2352, 0.0
        %v2407 = vmax.f32 %v2357, 0.0
        %v2408 = vmax.f32 %v2360, 0.0
        %v2409 = vmax.f32 %v2365, 0.0
        %v2410 = vmax.f32 %v2368, 0.0
        %v2411 = vmax.f32 %v2373, 0.0
        %v2412 = vmax.f32 %v2376, 0.0
        %v2413 = vmax.f32 %v2381, 0.0
        %v2414 = vmax.f32 %v2384, 0.0
        %v2415 = vmax.f32 %v2389, 0.0
        %v2416 = vmax.f32 %v2392, 0.0
        %v2417 = vmax.f32 %v2397, 0.0
        %v2418 = vmax.f32 %v2400, 0.0
        %v2419 = vpack.c.bf16 %v2404, %v2403
        %v2420 = vpack.c.bf16 %v2406, %v2405
        %v2421 = vpack.c.bf16 %v2408, %v2407
        %v2422 = vpack.c.bf16 %v2410, %v2409
        %v2423 = vpack.c.bf16 %v2412, %v2411
        %v2424 = vpack.c.bf16 %v2414, %v2413
        %v2425 = vpack.c.bf16 %v2416, %v2415
        %v2426 = vpack.c.bf16 %v2418, %v2417
        %v2427 = vld [vmem:[%s7] sm:$0xff]
        %v2428 = vld [vmem:[%s7 + $0x8] sm:$0xff]
        %v2429 = vld [vmem:[%s7 + $0x10] sm:$0xff]
        %v2430 = vld [vmem:[%s7 + $0x18] sm:$0xff]
        %v2431 = vld [vmem:[%s7 + $0x20] sm:$0xff]
        %v2432 = vld [vmem:[%s7 + $0x28] sm:$0xff]
        %v2433 = vld [vmem:[%s7 + $0x30] sm:$0xff]
        %v2434 = vld [vmem:[%s7 + $0x38] sm:$0xff]
        %v2435 = vld [vmem:[%s8] sm:$0x3]
        %v2437 = vlaneseq
        %v2438 = vshrl.u32 %v2437, 7
        %v2439 = vsub.s32 0, %v2438
        %v2440 = vrot.slane %v2435, %v2439
        %v2441 = vlaneseq
        %v2442 = vshrl.u32 %v2441, 7
        %v2443 = vsub.s32 1, %v2442
        %v2444 = vrot.slane %v2435, %v2443
        %v2455 = vunpack.c.l.b16 %v2427
        %v2456 = vunpack.c.h.b16 %v2427
        %v2457 = vunpack.c.l.b16 %v2428
        %v2458 = vunpack.c.h.b16 %v2428
        %v2459 = vunpack.c.l.b16 %v2429
        %v2460 = vunpack.c.h.b16 %v2429
        %v2461 = vunpack.c.l.b16 %v2430
        %v2462 = vunpack.c.h.b16 %v2430
        %v2463 = vunpack.c.l.b16 %v2431
        %v2464 = vunpack.c.h.b16 %v2431
        %v2465 = vunpack.c.l.b16 %v2432
        %v2466 = vunpack.c.h.b16 %v2432
        %v2467 = vunpack.c.l.b16 %v2433
        %v2468 = vunpack.c.h.b16 %v2433
        %v2469 = vunpack.c.l.b16 %v2434
        %v2470 = vunpack.c.h.b16 %v2434
        %v2471 = vpack.c.b16 %v2457, %v2455
        %v2472 = vpack.c.b16 %v2458, %v2456
        %v2473 = vpack.c.b16 %v2461, %v2459
        %v2474 = vpack.c.b16 %v2462, %v2460
        %v2475 = vpack.c.b16 %v2465, %v2463
        %v2476 = vpack.c.b16 %v2466, %v2464
        %v2477 = vpack.c.b16 %v2469, %v2467
        %v2478 = vpack.c.b16 %v2470, %v2468
        %v2488 = vsel %vm1680, %v2419, 0
        %v2491 = vsel %vm1680, %v2420, 0
        %v2494 = vsel %vm1680, %v2421, 0
        %v2497 = vsel %vm1680, %v2422, 0
        %v2500 = vsel %vm1680, %v2423, 0
        %v2503 = vsel %vm1680, %v2424, 0
        %v2506 = vsel %vm1680, %v2425, 0
        %v2509 = vsel %vm1680, %v2426, 0
        %2511 = vmatprep.subr.bf16.mxu0 %v2472
        %2512 = vmatpush1.bf16.msra.mxu0 %v2471
        %2513 = vmatprep.subr.bf16.mxu0 %v2474
        %2514 = vmatpush1.bf16.msra.mxu0 %v2473
        %2515 = vmatprep.subr.bf16.mxu0 %v2476
        %2516 = vmatpush1.bf16.msra.mxu0 %v2475
        %2517 = vmatprep.subr.bf16.mxu0 %v2478
        %2518 = vmatpush1.bf16.msra.mxu0 %v2477
        %2519 = vmatprep.subr.bf16.mxu0 0
        %2520 = vmatpush1.bf16.msra.mxu0 0
        %2521 = vmatprep.subr.bf16.mxu0 0
        %2522 = vmatpush1.bf16.msra.mxu0 0
        %2523 = vmatprep.subr.bf16.mxu0 0
        %2524 = vmatpush1.bf16.msra.mxu0 0
        %2525 = vmatprep.subr.bf16.mxu0 0
        %2526 = vmatpush1.bf16.msra.mxu0 0
        %2527 = vmatprep.subr.bf16.mxu0 0
        %2528 = vmatpush1.bf16.msra.mxu0 0
        %2529 = vmatprep.subr.bf16.mxu0 0
        %2530 = vmatpush1.bf16.msra.mxu0 0
        %2531 = vmatprep.subr.bf16.mxu0 0
        %2532 = vmatpush1.bf16.msra.mxu0 0
        %2533 = vmatprep.subr.bf16.mxu0 0
        %2534 = vmatpush1.bf16.msra.mxu0 0
        %2535 = vmatprep.subr.bf16.mxu0 0
        %2536 = vmatpush1.bf16.msra.mxu0 0
        %2537 = vmatprep.subr.bf16.mxu0 0
        %2538 = vmatpush1.bf16.msra.mxu0 0
        %2539 = vmatprep.subr.bf16.mxu0 0
        %2540 = vmatpush1.bf16.msra.mxu0 0
        %2541 = vmatprep.subr.bf16.mxu0 0
        %2542 = vmatpush1.bf16.msra.mxu0 0
        %2543 = vmatprep.mubr.bf16.mxu0 0
        %2544 = vmatmul.mubr.bf16.gmra.mrb[0].mxu0 %v2488
        %v2545 = vpop.f32.mrb[0].mxu0
        %v2546 = vadd.f32 %v2440, %v2545
        %v2547 = vpop.f32.mrb[0].mxu0
        %v2548 = vadd.f32 %v2444, %v2547
        %v2549 = vpop.f32.mrb[0].mxu0
        %v2550 = vadd.f32 %v2440, %v2549
        %v2551 = vpop.f32.mrb[0].mxu0
        %v2552 = vadd.f32 %v2444, %v2551
        %2553 = vmatprep.mubr.bf16.mxu0 0
        %2554 = vmatmul.mubr.bf16.gmra.mrb[0].mxu0 %v2491
        %v2555 = vpop.f32.mrb[0].mxu0
        %v2556 = vadd.f32 %v2440, %v2555
        %v2557 = vpop.f32.mrb[0].mxu0
        %v2558 = vadd.f32 %v2444, %v2557
        %v2559 = vpop.f32.mrb[0].mxu0
        %v2560 = vadd.f32 %v2440, %v2559
        %v2561 = vpop.f32.mrb[0].mxu0
        %v2562 = vadd.f32 %v2444, %v2561
        %2563 = vmatprep.mubr.bf16.mxu0 0
        %2564 = vmatmul.mubr.bf16.gmra.mrb[0].mxu0 %v2494
        %v2565 = vpop.f32.mrb[0].mxu0
        %v2566 = vadd.f32 %v2440, %v2565
        %v2567 = vpop.f32.mrb[0].mxu0
        %v2568 = vadd.f32 %v2444, %v2567
        %v2569 = vpop.f32.mrb[0].mxu0
        %v2570 = vadd.f32 %v2440, %v2569
        %v2571 = vpop.f32.mrb[0].mxu0
        %v2572 = vadd.f32 %v2444, %v2571
        %2573 = vmatprep.mubr.bf16.mxu0 0
        %2574 = vmatmul.mubr.bf16.gmra.mrb[0].mxu0 %v2497
        %v2575 = vpop.f32.mrb[0].mxu0
        %v2576 = vadd.f32 %v2440, %v2575
        %v2577 = vpop.f32.mrb[0].mxu0
        %v2578 = vadd.f32 %v2444, %v2577
        %v2579 = vpop.f32.mrb[0].mxu0
        %v2580 = vadd.f32 %v2440, %v2579
        %v2581 = vpop.f32.mrb[0].mxu0
        %v2582 = vadd.f32 %v2444, %v2581
        %2583 = vmatprep.mubr.bf16.mxu0 0
        %2584 = vmatmul.mubr.bf16.gmra.mrb[0].mxu0 %v2500
        %v2585 = vpop.f32.mrb[0].mxu0
        %v2586 = vadd.f32 %v2440, %v2585
        %v2587 = vpop.f32.mrb[0].mxu0
        %v2588 = vadd.f32 %v2444, %v2587
        %v2589 = vpop.f32.mrb[0].mxu0
        %v2590 = vadd.f32 %v2440, %v2589
        %v2591 = vpop.f32.mrb[0].mxu0
        %v2592 = vadd.f32 %v2444, %v2591
        %2593 = vmatprep.mubr.bf16.mxu0 0
        %2594 = vmatmul.mubr.bf16.gmra.mrb[0].mxu0 %v2503
        %v2595 = vpop.f32.mrb[0].mxu0
        %v2596 = vadd.f32 %v2440, %v2595
        %v2597 = vpop.f32.mrb[0].mxu0
        %v2598 = vadd.f32 %v2444, %v2597
        %v2599 = vpop.f32.mrb[0].mxu0
        %v2600 = vadd.f32 %v2440, %v2599
        %v2601 = vpop.f32.mrb[0].mxu0
        %v2602 = vadd.f32 %v2444, %v2601
        %2603 = vmatprep.mubr.bf16.mxu0 0
        %2604 = vmatmul.mubr.bf16.gmra.mrb[0].mxu0 %v2506
        %v2605 = vpop.f32.mrb[0].mxu0
        %v2606 = vadd.f32 %v2440, %v2605
        %v2607 = vpop.f32.mrb[0].mxu0
        %v2608 = vadd.f32 %v2444, %v2607
        %v2609 = vpop.f32.mrb[0].mxu0
        %v2610 = vadd.f32 %v2440, %v2609
        %v2611 = vpop.f32.mrb[0].mxu0
        %v2612 = vadd.f32 %v2444, %v2611
        %2613 = vmatprep.mubr.bf16.mxu0 0
        %2614 = vmatmul.mubr.bf16.gmra.mrb[0].mxu0 %v2509
        %v2615 = vpop.f32.mrb[0].mxu0
        %v2616 = vadd.f32 %v2440, %v2615
        %v2617 = vpop.f32.mrb[0].mxu0
        %v2618 = vadd.f32 %v2444, %v2617
        %v2619 = vpop.f32.mrb[0].mxu0
        %v2620 = vadd.f32 %v2440, %v2619
        %v2621 = vpop.f32.mrb[0].mxu0
        %v2622 = vadd.f32 %v2444, %v2621
        %2623 = vdwg.mxu0
        %v2624 = vld [vmem:[%s452] sm:$0xff]
        %v2625 = vld [vmem:[%s452 + $0x8] sm:$0xff]
        %v2626 = vld [vmem:[%s452 + $0x10] sm:$0xff]
        %v2627 = vld [vmem:[%s452 + $0x18] sm:$0xff]
        %v2628 = vld [vmem:[%s452 + $0x20] sm:$0xff]
        %v2629 = vld [vmem:[%s452 + $0x28] sm:$0xff]
        %v2630 = vld [vmem:[%s452 + $0x30] sm:$0xff]
        %v2631 = vld [vmem:[%s452 + $0x38] sm:$0xff]
        %v2632 = vld [vmem:[%s452 + $0x40] sm:$0xff]
        %v2633 = vld [vmem:[%s452 + $0x48] sm:$0xff]
        %v2634 = vld [vmem:[%s452 + $0x50] sm:$0xff]
        %v2635 = vld [vmem:[%s452 + $0x58] sm:$0xff]
        %v2636 = vld [vmem:[%s452 + $0x60] sm:$0xff]
        %v2637 = vld [vmem:[%s452 + $0x68] sm:$0xff]
        %v2638 = vld [vmem:[%s452 + $0x70] sm:$0xff]
        %v2639 = vld [vmem:[%s452 + $0x78] sm:$0xff]
        %v2640 = vld [vmem:[%s452 + $0x80] sm:$0xff]
        %v2641 = vld [vmem:[%s452 + $0x88] sm:$0xff]
        %v2642 = vld [vmem:[%s452 + $0x90] sm:$0xff]
        %v2643 = vld [vmem:[%s452 + $0x98] sm:$0xff]
        %v2644 = vld [vmem:[%s452 + $0xa0] sm:$0xff]
        %v2645 = vld [vmem:[%s452 + $0xa8] sm:$0xff]
        %v2646 = vld [vmem:[%s452 + $0xb0] sm:$0xff]
        %v2647 = vld [vmem:[%s452 + $0xb8] sm:$0xff]
        %v2648 = vld [vmem:[%s452 + $0xc0] sm:$0xff]
        %v2649 = vld [vmem:[%s452 + $0xc8] sm:$0xff]
        %v2650 = vld [vmem:[%s452 + $0xd0] sm:$0xff]
        %v2651 = vld [vmem:[%s452 + $0xd8] sm:$0xff]
        %v2652 = vld [vmem:[%s452 + $0xe0] sm:$0xff]
        %v2653 = vld [vmem:[%s452 + $0xe8] sm:$0xff]
        %v2654 = vld [vmem:[%s452 + $0xf0] sm:$0xff]
        %v2655 = vld [vmem:[%s452 + $0xf8] sm:$0xff]
        %v2656 = vadd.f32 %v2546, %v2624
        %v2657 = vadd.f32 %v2548, %v2625
        %v2658 = vadd.f32 %v2550, %v2626
        %v2659 = vadd.f32 %v2552, %v2627
        %v2660 = vadd.f32 %v2556, %v2628
        %v2661 = vadd.f32 %v2558, %v2629
        %v2662 = vadd.f32 %v2560, %v2630
        %v2663 = vadd.f32 %v2562, %v2631
        %v2664 = vadd.f32 %v2566, %v2632
        %v2665 = vadd.f32 %v2568, %v2633
        %v2666 = vadd.f32 %v2570, %v2634
        %v2667 = vadd.f32 %v2572, %v2635
        %v2668 = vadd.f32 %v2576, %v2636
        %v2669 = vadd.f32 %v2578, %v2637
        %v2670 = vadd.f32 %v2580, %v2638
        %v2671 = vadd.f32 %v2582, %v2639
        %v2672 = vadd.f32 %v2586, %v2640
        %v2673 = vadd.f32 %v2588, %v2641
        %v2674 = vadd.f32 %v2590, %v2642
        %v2675 = vadd.f32 %v2592, %v2643
        %v2676 = vadd.f32 %v2596, %v2644
        %v2677 = vadd.f32 %v2598, %v2645
        %v2678 = vadd.f32 %v2600, %v2646
        %v2679 = vadd.f32 %v2602, %v2647
        %v2680 = vadd.f32 %v2606, %v2648
        %v2681 = vadd.f32 %v2608, %v2649
        %v2682 = vadd.f32 %v2610, %v2650
        %v2683 = vadd.f32 %v2612, %v2651
        %v2684 = vadd.f32 %v2616, %v2652
        %v2685 = vadd.f32 %v2618, %v2653
        %v2686 = vadd.f32 %v2620, %v2654
        %v2687 = vadd.f32 %v2622, %v2655
        %v2688 = vmax.f32 %v2656, 0.0
        %v2689 = vmax.f32 %v2657, 0.0
        %v2690 = vmax.f32 %v2658, 0.0
        %v2691 = vmax.f32 %v2659, 0.0
        %v2692 = vmax.f32 %v2660, 0.0
        %v2693 = vmax.f32 %v2661, 0.0
        %v2694 = vmax.f32 %v2662, 0.0
        %v2695 = vmax.f32 %v2663, 0.0
        %v2696 = vmax.f32 %v2664, 0.0
        %v2697 = vmax.f32 %v2665, 0.0
        %v2698 = vmax.f32 %v2666, 0.0
        %v2699 = vmax.f32 %v2667, 0.0
        %v2700 = vmax.f32 %v2668, 0.0
        %v2701 = vmax.f32 %v2669, 0.0
        %v2702 = vmax.f32 %v2670, 0.0
        %v2703 = vmax.f32 %v2671, 0.0
        %v2704 = vmax.f32 %v2672, 0.0
        %v2705 = vmax.f32 %v2673, 0.0
        %v2706 = vmax.f32 %v2674, 0.0
        %v2707 = vmax.f32 %v2675, 0.0
        %v2708 = vmax.f32 %v2676, 0.0
        %v2709 = vmax.f32 %v2677, 0.0
        %v2710 = vmax.f32 %v2678, 0.0
        %v2711 = vmax.f32 %v2679, 0.0
        %v2712 = vmax.f32 %v2680, 0.0
        %v2713 = vmax.f32 %v2681, 0.0
        %v2714 = vmax.f32 %v2682, 0.0
        %v2715 = vmax.f32 %v2683, 0.0
        %v2716 = vmax.f32 %v2684, 0.0
        %v2717 = vmax.f32 %v2685, 0.0
        %v2718 = vmax.f32 %v2686, 0.0
        %v2719 = vmax.f32 %v2687, 0.0
        %2720 = vst [vmem:[%s442] sm:$0xff] %v2688
        %2721 = vst [vmem:[%s442 + $0x8] sm:$0xff] %v2689
        %2722 = vst [vmem:[%s442 + $0x10] sm:$0xff] %v2690
        %2723 = vst [vmem:[%s442 + $0x18] sm:$0xff] %v2691
        %2724 = vst [vmem:[%s442 + $0x20] sm:$0xff] %v2692
        %2725 = vst [vmem:[%s442 + $0x28] sm:$0xff] %v2693
        %2726 = vst [vmem:[%s442 + $0x30] sm:$0xff] %v2694
        %2727 = vst [vmem:[%s442 + $0x38] sm:$0xff] %v2695
        %2728 = vst [vmem:[%s442 + $0x40] sm:$0xff] %v2696
        %2729 = vst [vmem:[%s442 + $0x48] sm:$0xff] %v2697
        %2730 = vst [vmem:[%s442 + $0x50] sm:$0xff] %v2698
        %2731 = vst [vmem:[%s442 + $0x58] sm:$0xff] %v2699
        %2732 = vst [vmem:[%s442 + $0x60] sm:$0xff] %v2700
        %2733 = vst [vmem:[%s442 + $0x68] sm:$0xff] %v2701
        %2734 = vst [vmem:[%s442 + $0x70] sm:$0xff] %v2702
        %2735 = vst [vmem:[%s442 + $0x78] sm:$0xff] %v2703
        %2736 = vst [vmem:[%s442 + $0x80] sm:$0xff] %v2704
        %2737 = vst [vmem:[%s442 + $0x88] sm:$0xff] %v2705
        %2738 = vst [vmem:[%s442 + $0x90] sm:$0xff] %v2706
        %2739 = vst [vmem:[%s442 + $0x98] sm:$0xff] %v2707
        %2740 = vst [vmem:[%s442 + $0xa0] sm:$0xff] %v2708
        %2741 = vst [vmem:[%s442 + $0xa8] sm:$0xff] %v2709
        %2742 = vst [vmem:[%s442 + $0xb0] sm:$0xff] %v2710
        %2743 = vst [vmem:[%s442 + $0xb8] sm:$0xff] %v2711
        %2744 = vst [vmem:[%s442 + $0xc0] sm:$0xff] %v2712
        %2745 = vst [vmem:[%s442 + $0xc8] sm:$0xff] %v2713
        %2746 = vst [vmem:[%s442 + $0xd0] sm:$0xff] %v2714
        %2747 = vst [vmem:[%s442 + $0xd8] sm:$0xff] %v2715
        %2748 = vst [vmem:[%s442 + $0xe0] sm:$0xff] %v2716
        %2749 = vst [vmem:[%s442 + $0xe8] sm:$0xff] %v2717
        %2750 = vst [vmem:[%s442 + $0xf0] sm:$0xff] %v2718
        %2751 = vst [vmem:[%s442 + $0xf8] sm:$0xff] %v2719
        %s2752 = sand.u32 %s271, 1
        %s2753 = scalar_lea.sflag [#allocation4], %s2752
        %s2754 = sand.u32 %s271, 1
        %s2755 = smul.addr %s2754, 256
        %s2756 = scalar_lea.vmem [#allocation3], %s2755
        // Predicated region
        $region57: #{bottleneck_forward.1} parent=55 // pred_check
          %p2757 = pneg %p281
        $region58: #{bottleneck_forward.1} parent=55 // pred_check_branch
          %2759 = sbr.rel (%p2757) target = $region60
        $region59: #{bottleneck_forward.1} parent=55 // pred_region
          %s2760 = smul.u32 8, %s28
          %s2762 = ssub.s32 4096, 4096
          %2763 = vsyncadd %s2753, %s2762
          %s2764 = smul.addr %s2760, 4
          %s2765 = smul.addr %s27, 64
          %s2766 = sadd.s32 %s2764, %s2765
          %s2767 = smul.addr %s2766, 128
          %s2768 = scalar_lea.hbm %s9, %s2767
          %s2769 = sshll.u32 %s2756, 4
          %s2770 = int_to_ptr.vmem [resolvable:$true] %s2769
          %2775 = dma.vmem_to_hbm [thread:$0]  %s2770, 4096, %s2768, %s2753, 256, 256, 16
        $region60: #{bottleneck_forward.1} parent=55 // pred_fallthru
          _
      $region56: #{bottleneck_forward.1} parent=5 // pred_fallthru
        _
      %p2776 = scmp.le.s32.totalorder 2, %s18
      // Predicated region
      $region61: #{bottleneck_forward.1} parent=5 // pred_check
        %p2777 = pneg %p2776
      $region62: #{bottleneck_forward.1} parent=5 // pred_check_branch
        %2779 = sbr.rel (%p2777) target = $region64
      $region63: #{bottleneck_forward.1} parent=5 // pred_region
        %s2780 = ssub.s32 %s18, 2
        // Predicated region
        $region65: #{bottleneck_forward.1} parent=63 // pred_check
          %p2781 = pneg %p287
        $region66: #{bottleneck_forward.1} parent=63 // pred_check_branch
          %2783 = sbr.rel (%p2781) target = $region68
        $region67: #{bottleneck_forward.1} parent=63 // pred_region
          %s2784 = sand.u32 %s272, 1
          %s2785 = scalar_lea.sflag [#allocation4], %s2784
          %s2786 = sand.u32 %s272, 1
          %s2787 = smul.addr %s2786, 256
          %s2788 = scalar_lea.vmem [#allocation3], %s2787
          %2789 = dma.done %s2785, 4096
        $region68: #{bottleneck_forward.1} parent=63 // pred_fallthru
          _
      $region64: #{bottleneck_forward.1} parent=5 // pred_fallthru
        _
    $region6: #{bottleneck_forward.1} parent=1 // loop_footer
      %s22 = sadd.s32 1, %s18
    $region7: #{bottleneck_forward.1} parent=1 // loop_footer_branch
      %17 = sbr.rel target = $region3
    $region8: #{bottleneck_forward.1} parent=1 // loop_exit
      _
    %2790 = vsyncpa [#allocation4], 1
    %s2791 = scalar_lea.sflag [#allocation4], 1
    %2792 = vsyncpa %s2791, 1

</llo_original>
